<compile_context>
chip_gen: v6e
topology: v6e:2x2x1
jax: 0.10.0
libtpu: 0.0.40
codegen_flags: <defaults>
</compile_context>

<pallas_src>
import jax
import jax.numpy as jnp
from jax.experimental import pallas as pl
from jax.experimental.pallas import tpu as pltpu

INPUT_SIZE = 1024      # MLP input_size
HIDDEN = 512           # MLP hidden_size
NUM_CLASSES = 8        # synthetic num_classes (utils.get_domains_and_labels unavailable)
TARGET_ROWS = 1024     # per-grid-step row target (multiple of 256, v7x-safe)


def mlp_kernel(x_ref, w1_ref, b1_ref, w2_ref, b2_ref, w3_ref, b3_ref,
               feat_ref, logits_ref):
    f32 = jnp.float32
    bb, T, D = x_ref.shape
    H = w2_ref.shape[-1]

    # fc1: x already bf16 from HBM; MXU matmul with f32 accumulation.
    x = x_ref[...].reshape(bb * T, D)                       # free view (T % 8 == 0)
    h = jnp.maximum(
        jnp.dot(x, w1_ref[...], preferred_element_type=f32) + b1_ref[...], 0.0)

    # fc2: feed h as bf16 (identical numerics to casting at the matmul).
    feat = jnp.maximum(
        jnp.dot(h.astype(jnp.bfloat16), w2_ref[...],
                preferred_element_type=f32) + b2_ref[...], 0.0)

    feat3 = feat.reshape(bb, T, H)
    feat_ref[...] = feat3                                   # f32 feat out

    # AdaptiveAvgPool1d(1) over T fused via linearity (dropout is identity in
    # eval mode, fc3 is affine): mean_T(fc3(feat)) == fc3(mean_T(feat)).
    mean_feat = feat3.mean(axis=1)                          # (bb, H) f32
    logits = (jnp.dot(mean_feat.astype(jnp.bfloat16), w3_ref[...],
                      preferred_element_type=f32) + b3_ref[...])
    logits_ref[...] = logits[:, None, :]                    # (bb, 1, C)


def _choose_block_batches(B, T, target_rows=TARGET_ROWS):
    want = max(1, min(B, max(1, target_rows // max(T, 1))))
    # Keep the "parallel" grid axis >= 2 steps (>= 4 when tiles stay large) so
    # the v7x megacore shards it across both TensorCores.
    if B >= 4 and (B // 4) * T >= 512:
        want = min(want, B // 4)
    elif B >= 2:
        want = min(want, max(1, B // 2))
    # Largest divisor of B not exceeding `want` (grid divides exactly).
    for d in range(want, 0, -1):
        if B % d == 0:
            return d
    return 1


def mlp_forward(x, params, block_batches=None):
    """x: (B, T, INPUT_SIZE) -> (logits (B, C), feat (B, T, HIDDEN))."""
    w1, b1, w2, b2, w3, b3 = params
    B, T, D = x.shape
    H = w2.shape[-1]
    C = w3.shape[-1]

    if block_batches is None:
        block_batches = _choose_block_batches(B, T)
    assert B % block_batches == 0, "block_batches must divide B"
    bb = block_batches
    grid = (B // bb,)

    # bf16 activation + weight streaming (halves HBM traffic); biases f32.
    x_b = x.astype(jnp.bfloat16)
    w1b, w2b, w3b = (w.astype(jnp.bfloat16) for w in (w1, w2, w3))
    b1f, b2f, b3f = (b.reshape(1, -1).astype(jnp.float32) for b in (b1, b2, b3))

    def resident(a):  # full array, constant index_map -> stays VMEM-resident
        nd = a.ndim
        return pl.BlockSpec(a.shape, lambda i, _nd=nd: (0,) * _nd)

    feat, logits3 = pl.pallas_call(
        mlp_kernel,
        out_shape=(jax.ShapeDtypeStruct((B, T, H), jnp.float32),
                   jax.ShapeDtypeStruct((B, 1, C), jnp.float32)),
        grid=grid,
        in_specs=[pl.BlockSpec((bb, T, D), lambda i: (i, 0, 0)),
                  resident(w1b), resident(b1f),
                  resident(w2b), resident(b2f),
                  resident(w3b), resident(b3f)],
        out_specs=(pl.BlockSpec((bb, T, H), lambda i: (i, 0, 0)),
                   pl.BlockSpec((bb, 1, C), lambda i: (i, 0, 0))),
        compiler_params=pltpu.CompilerParams(
            dimension_semantics=("parallel",),
            vmem_limit_bytes=48 << 20),
    )(x_b, w1b, b1f, w2b, b2f, w3b, b3f)

    return logits3.reshape(B, C), feat


def init_linear(key, din, dout, scale=0.05):
    kw, kb = jax.random.split(key)
    w = jax.random.normal(kw, (din, dout), jnp.float32) * scale
    b = jax.random.normal(kb, (1, dout), jnp.float32) * scale
    return w, b


def make_params(key, num_classes=NUM_CLASSES):
    k1, k2, k3 = jax.random.split(key, 3)
    w1, b1 = init_linear(k1, INPUT_SIZE, HIDDEN)
    w2, b2 = init_linear(k2, HIDDEN, HIDDEN)
    w3, b3 = init_linear(k3, HIDDEN, num_classes)
    return (w1, b1, w2, b2, w3, b3)


def reference_forward(x, params):
    w1, b1, w2, b2, w3, b3 = params
    xf = x.astype(jnp.float32)
    h = jax.nn.relu(xf @ w1 + b1)
    feat = jax.nn.relu(h @ w2 + b2)
    logits = (feat @ w3 + b3).mean(axis=1)   # AdaptiveAvgPool1d(1) over T
    return logits, feat


if __name__ == "__main__":
    key = jax.random.PRNGKey(0)
    kx, kp = jax.random.split(key)

    B, T = 2, 8
    x = jax.random.normal(kx, (B, T, INPUT_SIZE), jnp.float32)
    params = make_params(kp)

    # Auto heuristic -> block_batches=1 -> 2-step "parallel" grid.
    logits, feat = mlp_forward(x, params)
    logits = jax.block_until_ready(logits)
    feat = jax.block_until_ready(feat)

    ref_logits, ref_feat = reference_forward(x, params)
    assert logits.shape == (B, NUM_CLASSES)
    assert feat.shape == (B, T, HIDDEN)
    # bf16 weight/activation streaming => looser tolerance than pure f32.
    assert jnp.allclose(logits, ref_logits, atol=5e-2, rtol=5e-2), (logits, ref_logits)
    assert jnp.allclose(feat, ref_feat, atol=5e-2, rtol=5e-2), "feat mismatch"

    print("KERNEL_OK")
</pallas_src>

<mosaic_0001>
module attributes {stable_mosaic.version = 11 : i64} {
  func.func @mlp_kernel(%arg0: i32, %arg1: memref<1x8x1024xbf16, #tpu.memory_space<vmem>>, %arg2: memref<1024x512xbf16, #tpu.memory_space<vmem>>, %arg3: memref<1x512xf32, #tpu.memory_space<vmem>>, %arg4: memref<512x512xbf16, #tpu.memory_space<vmem>>, %arg5: memref<1x512xf32, #tpu.memory_space<vmem>>, %arg6: memref<512x8xbf16, #tpu.memory_space<vmem>>, %arg7: memref<1x8xf32, #tpu.memory_space<vmem>>, %arg8: memref<1x8x512xf32, #tpu.memory_space<vmem>>, %arg9: memref<1x1x8xf32, #tpu.memory_space<vmem>>) attributes {dimension_semantics = [#tpu.dimension_semantics<parallel>], iteration_bounds = array<i64: 2>, scalar_prefetch = 0 : i64, scratch_operands = 0 : i64, tpu.core_type = #tpu.core_type<tc>, window_params = [{transform_indices = @transform_0, window_bounds = array<i64: 1, 8, 1024>}, {pipeline_mode = #tpu.pipeline_mode<synchronous>, transform_indices = @transform_1, window_bounds = array<i64: 1024, 512>}, {pipeline_mode = #tpu.pipeline_mode<synchronous>, transform_indices = @transform_2, window_bounds = array<i64: 1, 512>}, {pipeline_mode = #tpu.pipeline_mode<synchronous>, transform_indices = @transform_3, window_bounds = array<i64: 512, 512>}, {pipeline_mode = #tpu.pipeline_mode<synchronous>, transform_indices = @transform_4, window_bounds = array<i64: 1, 512>}, {pipeline_mode = #tpu.pipeline_mode<synchronous>, transform_indices = @transform_5, window_bounds = array<i64: 512, 8>}, {pipeline_mode = #tpu.pipeline_mode<synchronous>, transform_indices = @transform_6, window_bounds = array<i64: 1, 8>}, {transform_indices = @transform_7, window_bounds = array<i64: 1, 8, 512>}, {transform_indices = @transform_8, window_bounds = array<i64: 1, 1, 8>}]} {
    %c0 = arith.constant 0 : index
    %c0_0 = arith.constant 0 : index
    %c0_1 = arith.constant 0 : index
    %0 = vector.load %arg1[%c0, %c0_0, %c0_1] : memref<1x8x1024xbf16, #tpu.memory_space<vmem>>, vector<1x8x1024xbf16>
    %1 = vector.shape_cast %0 : vector<1x8x1024xbf16> to vector<8x1024xbf16>
    %c0_2 = arith.constant 0 : index
    %c0_3 = arith.constant 0 : index
    %2 = vector.load %arg2[%c0_2, %c0_3] : memref<1024x512xbf16, #tpu.memory_space<vmem>>, vector<1024x512xbf16>
    %cst = arith.constant dense<0.000000e+00> : vector<8x512xf32>
    %3 = tpu.matmul %1, %2, %cst {dimension_numbers = #tpu.dot_dimension_numbers<[1], [0], [0], [1], [0, 0, 1, 1], [], []>} : vector<8x1024xbf16>, vector<1024x512xbf16>, vector<8x512xf32> -> vector<8x512xf32>
    %c0_4 = arith.constant 0 : index
    %c0_5 = arith.constant 0 : index
    %4 = vector.load %arg3[%c0_4, %c0_5] : memref<1x512xf32, #tpu.memory_space<vmem>>, vector<1x512xf32>
    %5 = vector.broadcast %4 : vector<1x512xf32> to vector<8x512xf32>
    %6 = arith.addf %3, %5 : vector<8x512xf32>
    %cst_6 = arith.constant 0.000000e+00 : f32
    %7 = vector.broadcast %cst_6 : f32 to vector<8x512xf32>
    %8 = arith.maximumf %6, %7 : vector<8x512xf32>
    %9 = arith.truncf %8 : vector<8x512xf32> to vector<8x512xbf16>
    %c0_7 = arith.constant 0 : index
    %c0_8 = arith.constant 0 : index
    %10 = vector.load %arg4[%c0_7, %c0_8] : memref<512x512xbf16, #tpu.memory_space<vmem>>, vector<512x512xbf16>
    %cst_9 = arith.constant dense<0.000000e+00> : vector<8x512xf32>
    %11 = tpu.matmul %9, %10, %cst_9 {dimension_numbers = #tpu.dot_dimension_numbers<[1], [0], [0], [1], [0, 0, 1, 1], [], []>} : vector<8x512xbf16>, vector<512x512xbf16>, vector<8x512xf32> -> vector<8x512xf32>
    %c0_10 = arith.constant 0 : index
    %c0_11 = arith.constant 0 : index
    %12 = vector.load %arg5[%c0_10, %c0_11] : memref<1x512xf32, #tpu.memory_space<vmem>>, vector<1x512xf32>
    %13 = vector.broadcast %12 : vector<1x512xf32> to vector<8x512xf32>
    %14 = arith.addf %11, %13 : vector<8x512xf32>
    %cst_12 = arith.constant 0.000000e+00 : f32
    %15 = vector.broadcast %cst_12 : f32 to vector<8x512xf32>
    %16 = arith.maximumf %14, %15 : vector<8x512xf32>
    %17 = vector.shape_cast %16 : vector<8x512xf32> to vector<1x8x512xf32>
    %c0_13 = arith.constant 0 : index
    %c0_14 = arith.constant 0 : index
    %c0_15 = arith.constant 0 : index
    %18 = vector.load %arg8[%c0_13, %c0_14, %c0_15] : memref<1x8x512xf32, #tpu.memory_space<vmem>>, vector<1x8x512xf32>
    tpu.vector_store %arg8[%c0_13, %c0_14, %c0_15], %17 {strides = array<i32>} : memref<1x8x512xf32, #tpu.memory_space<vmem>>, vector<1x8x512xf32>,
    %cst_16 = arith.constant dense<0.000000e+00> : vector<1x512xf32>
    %19 = vector.multi_reduction <add>, %17, %cst_16 [1] : vector<1x8x512xf32> to vector<1x512xf32>
    %cst_17 = arith.constant 8.000000e+00 : f32
    %20 = vector.broadcast %cst_17 : f32 to vector<1x512xf32>
    %21 = arith.divf %19, %20 : vector<1x512xf32>
    %22 = arith.truncf %21 : vector<1x512xf32> to vector<1x512xbf16>
    %c0_18 = arith.constant 0 : index
    %c0_19 = arith.constant 0 : index
    %23 = vector.load %arg6[%c0_18, %c0_19] : memref<512x8xbf16, #tpu.memory_space<vmem>>, vector<512x8xbf16>
    %cst_20 = arith.constant dense<0.000000e+00> : vector<1x8xf32>
    %24 = tpu.matmul %22, %23, %cst_20 {dimension_numbers = #tpu.dot_dimension_numbers<[1], [0], [0], [1], [0, 0, 1, 1], [], []>} : vector<1x512xbf16>, vector<512x8xbf16>, vector<1x8xf32> -> vector<1x8xf32>
    %c0_21 = arith.constant 0 : index
    %c0_22 = arith.constant 0 : index
    %25 = vector.load %arg7[%c0_21, %c0_22] : memref<1x8xf32, #tpu.memory_space<vmem>>, vector<1x8xf32>
    %26 = arith.addf %24, %25 : vector<1x8xf32>
    %27 = vector.shape_cast %26 : vector<1x8xf32> to vector<1x1x8xf32>
    %c0_23 = arith.constant 0 : index
    %c0_24 = arith.constant 0 : index
    %c0_25 = arith.constant 0 : index
    %28 = vector.load %arg9[%c0_23, %c0_24, %c0_25] : memref<1x1x8xf32, #tpu.memory_space<vmem>>, vector<1x1x8xf32>
    tpu.vector_store %arg9[%c0_23, %c0_24, %c0_25], %27 {strides = array<i32>} : memref<1x1x8xf32, #tpu.memory_space<vmem>>, vector<1x1x8xf32>,
    return
  }
  func.func @transform_0(%arg0: i32) -> (i32, i32, i32) {
    %c0_i32 = arith.constant 0 : i32
    %c0_i32_0 = arith.constant 0 : i32
    %c0_i32_1 = arith.constant 0 : i32
    return %arg0, %c0_i32, %c0_i32_0 : i32, i32, i32
  }
  func.func @transform_1(%arg0: i32) -> (i32, i32) {
    %c0_i32 = arith.constant 0 : i32
    %c0_i32_0 = arith.constant 0 : i32
    %c0_i32_1 = arith.constant 0 : i32
    return %c0_i32, %c0_i32_0 : i32, i32
  }
  func.func @transform_2(%arg0: i32) -> (i32, i32) {
    %c0_i32 = arith.constant 0 : i32
    %c0_i32_0 = arith.constant 0 : i32
    %c0_i32_1 = arith.constant 0 : i32
    return %c0_i32, %c0_i32_0 : i32, i32
  }
  func.func @transform_3(%arg0: i32) -> (i32, i32) {
    %c0_i32 = arith.constant 0 : i32
    %c0_i32_0 = arith.constant 0 : i32
    %c0_i32_1 = arith.constant 0 : i32
    return %c0_i32, %c0_i32_0 : i32, i32
  }
  func.func @transform_4(%arg0: i32) -> (i32, i32) {
    %c0_i32 = arith.constant 0 : i32
    %c0_i32_0 = arith.constant 0 : i32
    %c0_i32_1 = arith.constant 0 : i32
    return %c0_i32, %c0_i32_0 : i32, i32
  }
  func.func @transform_5(%arg0: i32) -> (i32, i32) {
    %c0_i32 = arith.constant 0 : i32
    %c0_i32_0 = arith.constant 0 : i32
    %c0_i32_1 = arith.constant 0 : i32
    return %c0_i32, %c0_i32_0 : i32, i32
  }
  func.func @transform_6(%arg0: i32) -> (i32, i32) {
    %c0_i32 = arith.constant 0 : i32
    %c0_i32_0 = arith.constant 0 : i32
    %c0_i32_1 = arith.constant 0 : i32
    return %c0_i32, %c0_i32_0 : i32, i32
  }
  func.func @transform_7(%arg0: i32) -> (i32, i32, i32) {
    %c0_i32 = arith.constant 0 : i32
    %c0_i32_0 = arith.constant 0 : i32
    %c0_i32_1 = arith.constant 0 : i32
    return %arg0, %c0_i32, %c0_i32_0 : i32, i32, i32
  }
  func.func @transform_8(%arg0: i32) -> (i32, i32, i32) {
    %c0_i32 = arith.constant 0 : i32
    %c0_i32_0 = arith.constant 0 : i32
    %c0_i32_1 = arith.constant 0 : i32
    return %arg0, %c0_i32, %c0_i32_0 : i32, i32, i32
  }
}

</mosaic_0001>

<llo_original>
// kernel: tpu_custom_call.1
$region0: #{tpu_custom_call.1}
  #allocation0 [shape = 'u32[]', space=smem, size = 0x4, offset = 0x4, fixed_abs, tag = 'smem constant byte address 0x4 - core index']
  #allocation1 [shape = 'u32[144,128]{1,0:T(1,128)}', space=vmem, size = 0x12000, scoped, tag = 'internal scratch']
  %s0 = inlined_call_operand.vmem [shape: bf16[2,8,1024], index: 0, kind: input, shape index: {}]
  %s1 = inlined_call_operand.hbm [shape: bf16[1024,512], index: 1, kind: input, shape index: {}]
  %s2 = inlined_call_operand.vmem [shape: f32[1,512], index: 2, kind: input, shape index: {}]
  %s3 = inlined_call_operand.hbm [shape: bf16[512,512], index: 3, kind: input, shape index: {}]
  %s4 = inlined_call_operand.vmem [shape: f32[1,512], index: 4, kind: input, shape index: {}]
  %s5 = inlined_call_operand.vmem [shape: bf16[512,8], index: 5, kind: input, shape index: {}]
  %s6 = inlined_call_operand.vmem [shape: f32[1,8], index: 6, kind: input, shape index: {}]
  %s7 = inlined_call_operand.hbm [shape: f32[2,8,512], index: 7, kind: output, shape index: {0}]
  %s8 = inlined_call_operand.hbm [shape: f32[2,1,8], index: 8, kind: output, shape index: {1}]
  %9 = xla_tuple %s7, %s8
  %s10 = sld [smem:[#allocation0]]
  $region77: #{tpu_custom_call.1} parent=0
    _
  %s12 = ssub.s32 1, %s10
  %s13 = scalar_select 0, %s12, %s10
  $region1: #{tpu_custom_call.1} parent=0
    #allocation2 [shape = 'u8[1048576]{0}', space=vmem, size = 0x100000, scoped, tag = 'input window, operand 1, single buffered']
    #allocation3 [shape = 's32[2]{0}', space=sflag, size = 0x8, scoped, tag = 'scoped memory for tpu_custom_call.1']
    #allocation4 [shape = 's32[2]{0}', space=sflag, size = 0x8, scoped, tag = 'scoped memory for tpu_custom_call.1']
    #allocation5 [shape = 'u8[524288]{0}', space=vmem, size = 0x80000, scoped, tag = 'input window, operand 3, single buffered']
    #allocation6 [shape = 's32[1]{0}', space=sflag, size = 0x4, scoped, tag = 'scoped memory for tpu_custom_call.1']
    #allocation7 [shape = 'u8[32768]{0}', space=vmem, size = 0x8000, scoped, tag = 'output window, operand 0']
    #allocation8 [shape = 'u8[1024]{0}', space=vmem, size = 0x400, scoped, tag = 'output window, operand 1']
    #allocation9 [shape = 's32[2]{0}', space=sflag, size = 0x8, scoped, tag = 'scoped memory for tpu_custom_call.1']
    %14 = vsyncpa [#allocation3], 0
    %15 = vsyncpa [#allocation6], 0
    %16 = vsyncpa [#allocation4], 0
    %s17 = scalar_lea.sflag [#allocation4], 1
    %18 = vsyncpa %s17, 0
    %19 = vsyncpa [#allocation9], 0
    %s20 = scalar_lea.sflag [#allocation9], 1
    %21 = vsyncpa %s20, 0
    loop: start=0, step=1, limit=4
    $region2: #{tpu_custom_call.1} parent=1 // loop_pre_header
      _
    $region3: #{tpu_custom_call.1} parent=1 // loop_header
      %s23 = sphi 0, %s27
      %p24 = scmp.ge.s32.totalorder %s23, 4
      %s33 = sphi 0, %s35
      %s36 = sphi 0, %s33
      %s37 = sphi 0, %s36
      %s53 = sphi 0, %s37
      %s57 = sphi 0, %s57
      %s59 = sphi 0, %s57
      %s60 = sphi 0, %s59
      %s74 = sphi 0, %s60
      %s78 = sphi 0, %s78
      %s80 = sphi 0, %s78
      %s81 = sphi 0, %s80
      %s95 = sphi 0, %s81
      %s99 = sphi 0, %s99
      %s101 = sphi 0, %s99
      %s102 = sphi 0, %s101
      %s116 = sphi 0, %s102
      %s120 = sphi 0, %s120
      %s122 = sphi 0, %s120
      %s123 = sphi 0, %s122
      %s137 = sphi 0, %s123
      %s141 = sphi 0, %s141
      %s143 = sphi 0, %s141
      %s144 = sphi 0, %s143
      %s158 = sphi 0, %s144
      %s162 = sphi 0, %s162
      %s164 = sphi 0, %s162
      %s165 = sphi 0, %s164
      %s179 = sphi 0, %s165
      %s185 = sphi 0, %s187
      %s188 = sphi 0, %s185
      %s189 = sphi 0, %s188
      %s205 = sphi 0, %s189
      %s211 = sphi 0, %s213
      %s214 = sphi 0, %s211
      %s215 = sphi 0, %s214
      %s231 = sphi 0, %s215
    $region4: #{tpu_custom_call.1} parent=1 // loop_header_branch
      %26 = sbr.rel (%p24) target = $region8
    $region5: #{tpu_custom_call.1} parent=1 // loop_body
      %s28 = ssub.s32 %s23, 1
      %s29 = ssub.s32 %s23, 2
      %s30 = sadd.s32 %s23, 1
      %s31 = ssub.s32 %s23, %s30
      %p32 = scmp.eq.s32.totalorder %s31, 0
      %s34 = sadd.s32 %s33, 1
      %s35 = scalar_select %p32, %s33, %s34
      %p38 = pneg %p32
      %p39 = scmp.eq.s32.totalorder %s23, 1
      %p40 = por %p38, %p39
      %p41 = scmp.ne.s32.totalorder %s33, %s36
      %p42 = scmp.eq.s32.totalorder %s23, 0
      %p43 = por %p41, %p42
      %p44 = scmp.ne.s32.totalorder %s33, %s36
      %p45 = scmp.eq.s32.totalorder %s28, 1
      %p46 = por %p44, %p45
      %p47 = scmp.ne.s32.totalorder %s36, %s37
      %p48 = scmp.eq.s32.totalorder %s28, 0
      %p49 = por %p47, %p48
      %p50 = scmp.ne.s32.totalorder %s36, %s37
      %p51 = scmp.eq.s32.totalorder %s29, 1
      %p52 = por %p50, %p51
      %p54 = scmp.ne.s32.totalorder %s37, %s53
      %p55 = scmp.eq.s32.totalorder %s29, 0
      %p56 = por %p54, %p55
      %s58 = sadd.s32 %s57, 1
      %p61 = scmp.eq.s32.totalorder %s23, 1
      %p62 = scmp.ne.s32.totalorder %s57, %s59
      %p63 = scmp.eq.s32.totalorder %s23, 0
      %p64 = por %p62, %p63
      %p65 = scmp.ne.s32.totalorder %s57, %s59
      %p66 = scmp.eq.s32.totalorder %s28, 1
      %p67 = por %p65, %p66
      %p68 = scmp.ne.s32.totalorder %s59, %s60
      %p69 = scmp.eq.s32.totalorder %s28, 0
      %p70 = por %p68, %p69
      %p71 = scmp.ne.s32.totalorder %s59, %s60
      %p72 = scmp.eq.s32.totalorder %s29, 1
      %p73 = por %p71, %p72
      %p75 = scmp.ne.s32.totalorder %s60, %s74
      %p76 = scmp.eq.s32.totalorder %s29, 0
      %p77 = por %p75, %p76
      %s79 = sadd.s32 %s78, 1
      %p82 = scmp.eq.s32.totalorder %s23, 1
      %p83 = scmp.ne.s32.totalorder %s78, %s80
      %p84 = scmp.eq.s32.totalorder %s23, 0
      %p85 = por %p83, %p84
      %p86 = scmp.ne.s32.totalorder %s78, %s80
      %p87 = scmp.eq.s32.totalorder %s28, 1
      %p88 = por %p86, %p87
      %p89 = scmp.ne.s32.totalorder %s80, %s81
      %p90 = scmp.eq.s32.totalorder %s28, 0
      %p91 = por %p89, %p90
      %p92 = scmp.ne.s32.totalorder %s80, %s81
      %p93 = scmp.eq.s32.totalorder %s29, 1
      %p94 = por %p92, %p93
      %p96 = scmp.ne.s32.totalorder %s81, %s95
      %p97 = scmp.eq.s32.totalorder %s29, 0
      %p98 = por %p96, %p97
      %s100 = sadd.s32 %s99, 1
      %p103 = scmp.eq.s32.totalorder %s23, 1
      %p104 = scmp.ne.s32.totalorder %s99, %s101
      %p105 = scmp.eq.s32.totalorder %s23, 0
      %p106 = por %p104, %p105
      %p107 = scmp.ne.s32.totalorder %s99, %s101
      %p108 = scmp.eq.s32.totalorder %s28, 1
      %p109 = por %p107, %p108
      %p110 = scmp.ne.s32.totalorder %s101, %s102
      %p111 = scmp.eq.s32.totalorder %s28, 0
      %p112 = por %p110, %p111
      %p113 = scmp.ne.s32.totalorder %s101, %s102
      %p114 = scmp.eq.s32.totalorder %s29, 1
      %p115 = por %p113, %p114
      %p117 = scmp.ne.s32.totalorder %s102, %s116
      %p118 = scmp.eq.s32.totalorder %s29, 0
      %p119 = por %p117, %p118
      %s121 = sadd.s32 %s120, 1
      %p124 = scmp.eq.s32.totalorder %s23, 1
      %p125 = scmp.ne.s32.totalorder %s120, %s122
      %p126 = scmp.eq.s32.totalorder %s23, 0
      %p127 = por %p125, %p126
      %p128 = scmp.ne.s32.totalorder %s120, %s122
      %p129 = scmp.eq.s32.totalorder %s28, 1
      %p130 = por %p128, %p129
      %p131 = scmp.ne.s32.totalorder %s122, %s123
      %p132 = scmp.eq.s32.totalorder %s28, 0
      %p133 = por %p131, %p132
      %p134 = scmp.ne.s32.totalorder %s122, %s123
      %p135 = scmp.eq.s32.totalorder %s29, 1
      %p136 = por %p134, %p135
      %p138 = scmp.ne.s32.totalorder %s123, %s137
      %p139 = scmp.eq.s32.totalorder %s29, 0
      %p140 = por %p138, %p139
      %s142 = sadd.s32 %s141, 1
      %p145 = scmp.eq.s32.totalorder %s23, 1
      %p146 = scmp.ne.s32.totalorder %s141, %s143
      %p147 = scmp.eq.s32.totalorder %s23, 0
      %p148 = por %p146, %p147
      %p149 = scmp.ne.s32.totalorder %s141, %s143
      %p150 = scmp.eq.s32.totalorder %s28, 1
      %p151 = por %p149, %p150
      %p152 = scmp.ne.s32.totalorder %s143, %s144
      %p153 = scmp.eq.s32.totalorder %s28, 0
      %p154 = por %p152, %p153
      %p155 = scmp.ne.s32.totalorder %s143, %s144
      %p156 = scmp.eq.s32.totalorder %s29, 1
      %p157 = por %p155, %p156
      %p159 = scmp.ne.s32.totalorder %s144, %s158
      %p160 = scmp.eq.s32.totalorder %s29, 0
      %p161 = por %p159, %p160
      %s163 = sadd.s32 %s162, 1
      %p166 = scmp.eq.s32.totalorder %s23, 1
      %p167 = scmp.ne.s32.totalorder %s162, %s164
      %p168 = scmp.eq.s32.totalorder %s23, 0
      %p169 = por %p167, %p168
      %p170 = scmp.ne.s32.totalorder %s162, %s164
      %p171 = scmp.eq.s32.totalorder %s28, 1
      %p172 = por %p170, %p171
      %p173 = scmp.ne.s32.totalorder %s164, %s165
      %p174 = scmp.eq.s32.totalorder %s28, 0
      %p175 = por %p173, %p174
      %p176 = scmp.ne.s32.totalorder %s164, %s165
      %p177 = scmp.eq.s32.totalorder %s29, 1
      %p178 = por %p176, %p177
      %p180 = scmp.ne.s32.totalorder %s165, %s179
      %p181 = scmp.eq.s32.totalorder %s29, 0
      %p182 = por %p180, %p181
      %s183 = ssub.s32 %s23, %s30
      %p184 = scmp.eq.s32.totalorder %s183, 0
      %s186 = sadd.s32 %s185, 1
      %s187 = scalar_select %p184, %s185, %s186
      %p190 = pneg %p184
      %p191 = scmp.eq.s32.totalorder %s23, 1
      %p192 = por %p190, %p191
      %p193 = scmp.ne.s32.totalorder %s185, %s188
      %p194 = scmp.eq.s32.totalorder %s23, 0
      %p195 = por %p193, %p194
      %p196 = scmp.ne.s32.totalorder %s185, %s188
      %p197 = scmp.eq.s32.totalorder %s28, 1
      %p198 = por %p196, %p197
      %p199 = scmp.ne.s32.totalorder %s188, %s189
      %p200 = scmp.eq.s32.totalorder %s28, 0
      %p201 = por %p199, %p200
      %p202 = scmp.ne.s32.totalorder %s188, %s189
      %p203 = scmp.eq.s32.totalorder %s29, 1
      %p204 = por %p202, %p203
      %p206 = scmp.ne.s32.totalorder %s189, %s205
      %p207 = scmp.eq.s32.totalorder %s29, 0
      %p208 = por %p206, %p207
      %s209 = ssub.s32 %s23, %s30
      %p210 = scmp.eq.s32.totalorder %s209, 0
      %s212 = sadd.s32 %s211, 1
      %s213 = scalar_select %p210, %s211, %s212
      %p216 = pneg %p210
      %p217 = scmp.eq.s32.totalorder %s23, 1
      %p218 = por %p216, %p217
      %p219 = scmp.ne.s32.totalorder %s211, %s214
      %p220 = scmp.eq.s32.totalorder %s23, 0
      %p221 = por %p219, %p220
      %p222 = scmp.ne.s32.totalorder %s211, %s214
      %p223 = scmp.eq.s32.totalorder %s28, 1
      %p224 = por %p222, %p223
      %p225 = scmp.ne.s32.totalorder %s214, %s215
      %p226 = scmp.eq.s32.totalorder %s28, 0
      %p227 = por %p225, %p226
      %p228 = scmp.ne.s32.totalorder %s214, %s215
      %p229 = scmp.eq.s32.totalorder %s29, 1
      %p230 = por %p228, %p229
      %p232 = scmp.ne.s32.totalorder %s215, %s231
      %p233 = scmp.eq.s32.totalorder %s29, 0
      %p234 = por %p232, %p233
      %p235 = scmp.le.s32.totalorder 1, %s23
      %p236 = scmp.lt.s32.totalorder %s23, 3
      %p237 = pnand %p235, %p236
      %p238 = pneg %p237
      // Predicated region
      $region9: #{tpu_custom_call.1} parent=5 // pred_check
        _
      $region10: #{tpu_custom_call.1} parent=5 // pred_check_branch
        %240 = sbr.rel (%p237) target = $region12
      $region11: #{tpu_custom_call.1} parent=5 // pred_region
        %s241 = ssub.s32 %s23, 1
        // Predicated region
        $region13: #{tpu_custom_call.1} parent=11 // pred_check
          %p242 = pneg %p70
        $region14: #{tpu_custom_call.1} parent=11 // pred_check_branch
          %244 = sbr.rel (%p242) target = $region16
        $region15: #{tpu_custom_call.1} parent=11 // pred_region
          %s246 = ssub.s32 32768, 32768
          %247 = vsyncadd [#allocation3], %s246
          %s248 = sshll.u32 [#allocation2], 4
          %s249 = int_to_ptr.vmem [resolvable:$true] %s248
          %254 = dma.hbm_to_vmem [thread:$0]  %s1, 32768, %s249, [#allocation3], 256, 256, 16
        $region16: #{tpu_custom_call.1} parent=11 // pred_fallthru
          _
        // Predicated region
        $region17: #{tpu_custom_call.1} parent=11 // pred_check
          %p255 = pneg %p91
        $region18: #{tpu_custom_call.1} parent=11 // pred_check_branch
          %257 = sbr.rel (%p255) target = $region20
        $region19: #{tpu_custom_call.1} parent=11 // pred_region
          _
        $region20: #{tpu_custom_call.1} parent=11 // pred_fallthru
          _
        // Predicated region
        $region21: #{tpu_custom_call.1} parent=11 // pred_check
          %p258 = pneg %p112
        $region22: #{tpu_custom_call.1} parent=11 // pred_check_branch
          %260 = sbr.rel (%p258) target = $region24
        $region23: #{tpu_custom_call.1} parent=11 // pred_region
          %s262 = ssub.s32 16384, 16384
          %263 = vsyncadd [#allocation6], %s262
          %s264 = sshll.u32 [#allocation5], 4
          %s265 = int_to_ptr.vmem [resolvable:$true] %s264
          %270 = dma.hbm_to_vmem [thread:$0]  %s3, 16384, %s265, [#allocation6], 256, 256, 16
        $region24: #{tpu_custom_call.1} parent=11 // pred_fallthru
          _
        // Predicated region
        $region25: #{tpu_custom_call.1} parent=11 // pred_check
          %p271 = pneg %p133
        $region26: #{tpu_custom_call.1} parent=11 // pred_check_branch
          %273 = sbr.rel (%p271) target = $region28
        $region27: #{tpu_custom_call.1} parent=11 // pred_region
          _
        $region28: #{tpu_custom_call.1} parent=11 // pred_fallthru
          _
        // Predicated region
        $region29: #{tpu_custom_call.1} parent=11 // pred_check
          %p274 = pneg %p154
        $region30: #{tpu_custom_call.1} parent=11 // pred_check_branch
          %276 = sbr.rel (%p274) target = $region32
        $region31: #{tpu_custom_call.1} parent=11 // pred_region
          _
        $region32: #{tpu_custom_call.1} parent=11 // pred_fallthru
          _
        // Predicated region
        $region33: #{tpu_custom_call.1} parent=11 // pred_check
          %p277 = pneg %p175
        $region34: #{tpu_custom_call.1} parent=11 // pred_check_branch
          %279 = sbr.rel (%p277) target = $region36
        $region35: #{tpu_custom_call.1} parent=11 // pred_region
          _
        $region36: #{tpu_custom_call.1} parent=11 // pred_fallthru
          _
      $region12: #{tpu_custom_call.1} parent=5 // pred_fallthru
        _
      %p280 = scmp.lt.s32.totalorder %s23, 2
      // Predicated region
      $region37: #{tpu_custom_call.1} parent=5 // pred_check
        %p281 = pneg %p280
      $region38: #{tpu_custom_call.1} parent=5 // pred_check_branch
        %283 = sbr.rel (%p281) target = $region40
      $region39: #{tpu_custom_call.1} parent=5 // pred_region
        // Predicated region
        $region41: #{tpu_custom_call.1} parent=39 // pred_check
          %p284 = pneg %p43
        $region42: #{tpu_custom_call.1} parent=39 // pred_check_branch
          %286 = sbr.rel (%p284) target = $region44
        $region43: #{tpu_custom_call.1} parent=39 // pred_region
          %p287 = scmp.lt.s32.totalorder %s23, 1
          %s288 = scalar_select %p287, %s23, 1
          %s289 = smul.addr %s288, 8
          %s290 = smul.addr %s289, 4
          %s291 = scalar_lea.vmem %s0, %s290
        $region44: #{tpu_custom_call.1} parent=39 // pred_fallthru
          _
      $region40: #{tpu_custom_call.1} parent=5 // pred_fallthru
        _
      %p292 = scmp.le.s32.totalorder 1, %s23
      %p293 = scmp.lt.s32.totalorder %s23, 3
      %p294 = pnand %p292, %p293
      %p295 = pneg %p294
      // Predicated region
      $region45: #{tpu_custom_call.1} parent=5 // pred_check
        _
      $region46: #{tpu_custom_call.1} parent=5 // pred_check_branch
        %297 = sbr.rel (%p294) target = $region48
      $region47: #{tpu_custom_call.1} parent=5 // pred_region
        %s298 = ssub.s32 %s23, 1
        // Predicated region
        $region49: #{tpu_custom_call.1} parent=47 // pred_check
          %p299 = pneg %p70
        $region50: #{tpu_custom_call.1} parent=47 // pred_check_branch
          %301 = sbr.rel (%p299) target = $region52
        $region51: #{tpu_custom_call.1} parent=47 // pred_region
          %302 = dma.done [#allocation3], 32768
        $region52: #{tpu_custom_call.1} parent=47 // pred_fallthru
          _
        // Predicated region
        $region53: #{tpu_custom_call.1} parent=47 // pred_check
          %p303 = pneg %p112
        $region54: #{tpu_custom_call.1} parent=47 // pred_check_branch
          %305 = sbr.rel (%p303) target = $region56
        $region55: #{tpu_custom_call.1} parent=47 // pred_region
          %306 = dma.done [#allocation6], 16384
        $region56: #{tpu_custom_call.1} parent=47 // pred_fallthru
          _
        %p307 = scmp.lt.s32.totalorder %s28, 1
        %s308 = scalar_select %p307, %s28, 1
        %s309 = smul.addr %s308, 8
        %s310 = smul.addr %s309, 4
        %s311 = scalar_lea.vmem %s0, %s310
        %p312 = pneg %p49
        %p313 = pneg %p46
        %p314 = pneg %p70
        %p315 = pneg %p67
        %p316 = pneg %p91
        %p317 = pneg %p88
        %p318 = pneg %p112
        %p319 = pneg %p109
        %p320 = pneg %p133
        %p321 = pneg %p130
        %p322 = pneg %p154
        %p323 = pneg %p151
        %p324 = pneg %p175
        %p325 = pneg %p172
        %p326 = pneg %p201
        %p327 = pneg %p198
        %s328 = sand.u32 %s188, 1
        %s329 = scalar_lea.sflag [#allocation4], %s328
        %s330 = sand.u32 %s188, 1
        %s331 = smul.addr %s330, 32
        %s332 = scalar_lea.vmem [#allocation7], %s331
        %p333 = pneg %p227
        %p334 = pneg %p224
        %s335 = sand.u32 %s214, 1
        %s336 = scalar_lea.sflag [#allocation9], %s335
        %s337 = sand.u32 %s214, 1
        %s338 = scalar_lea.vmem [#allocation8], %s337
        %p339 = scmp.lt.s32.totalorder %s28, 1
        %s340 = scalar_select %p339, %s28, 1
        %s341 = smul.addr %s340, 8
        %s342 = smul.addr %s341, 4
        %s343 = scalar_lea.vmem %s0, %s342
        %v345 = vld [vmem:[%s343] sm:$0xff]
        %v346 = vld [vmem:[%s343 + $0x8] sm:$0xff]
        %v347 = vld [vmem:[%s343 + $0x10] sm:$0xff]
        %v348 = vld [vmem:[%s343 + $0x18] sm:$0xff]
        %v349 = vld [vmem:[#allocation2] sm:$0xff]
        %v350 = vld [vmem:[#allocation2 + $0x8] sm:$0xff]
        %v351 = vld [vmem:[#allocation2 + $0x10] sm:$0xff]
        %v352 = vld [vmem:[#allocation2 + $0x18] sm:$0xff]
        %v353 = vld [vmem:[#allocation2 + $0x20] sm:$0xff]
        %v354 = vld [vmem:[#allocation2 + $0x28] sm:$0xff]
        %v355 = vld [vmem:[#allocation2 + $0x30] sm:$0xff]
        %v356 = vld [vmem:[#allocation2 + $0x38] sm:$0xff]
        %v357 = vld [vmem:[#allocation2 + $0x40] sm:$0xff]
        %v358 = vld [vmem:[#allocation2 + $0x48] sm:$0xff]
        %v359 = vld [vmem:[#allocation2 + $0x50] sm:$0xff]
        %v360 = vld [vmem:[#allocation2 + $0x58] sm:$0xff]
        %v361 = vld [vmem:[#allocation2 + $0x60] sm:$0xff]
        %v362 = vld [vmem:[#allocation2 + $0x68] sm:$0xff]
        %v363 = vld [vmem:[#allocation2 + $0x70] sm:$0xff]
        %v364 = vld [vmem:[#allocation2 + $0x78] sm:$0xff]
        %v365 = vld [vmem:[#allocation2 + $0x80] sm:$0xff]
        %v366 = vld [vmem:[#allocation2 + $0x88] sm:$0xff]
        %v367 = vld [vmem:[#allocation2 + $0x90] sm:$0xff]
        %v368 = vld [vmem:[#allocation2 + $0x98] sm:$0xff]
        %v369 = vld [vmem:[#allocation2 + $0xa0] sm:$0xff]
        %v370 = vld [vmem:[#allocation2 + $0xa8] sm:$0xff]
        %v371 = vld [vmem:[#allocation2 + $0xb0] sm:$0xff]
        %v372 = vld [vmem:[#allocation2 + $0xb8] sm:$0xff]
        %v373 = vld [vmem:[#allocation2 + $0xc0] sm:$0xff]
        %v374 = vld [vmem:[#allocation2 + $0xc8] sm:$0xff]
        %v375 = vld [vmem:[#allocation2 + $0xd0] sm:$0xff]
        %v376 = vld [vmem:[#allocation2 + $0xd8] sm:$0xff]
        %v377 = vld [vmem:[#allocation2 + $0xe0] sm:$0xff]
        %v378 = vld [vmem:[#allocation2 + $0xe8] sm:$0xff]
        %v379 = vld [vmem:[#allocation2 + $0xf0] sm:$0xff]
        %v380 = vld [vmem:[#allocation2 + $0xf8] sm:$0xff]
        %v381 = vld [vmem:[#allocation2 + $0x100] sm:$0xff]
        %v382 = vld [vmem:[#allocation2 + $0x108] sm:$0xff]
        %v383 = vld [vmem:[#allocation2 + $0x110] sm:$0xff]
        %v384 = vld [vmem:[#allocation2 + $0x118] sm:$0xff]
        %v385 = vld [vmem:[#allocation2 + $0x120] sm:$0xff]
        %v386 = vld [vmem:[#allocation2 + $0x128] sm:$0xff]
        %v387 = vld [vmem:[#allocation2 + $0x130] sm:$0xff]
        %v388 = vld [vmem:[#allocation2 + $0x138] sm:$0xff]
        %v389 = vld [vmem:[#allocation2 + $0x140] sm:$0xff]
        %v390 = vld [vmem:[#allocation2 + $0x148] sm:$0xff]
        %v391 = vld [vmem:[#allocation2 + $0x150] sm:$0xff]
        %v392 = vld [vmem:[#allocation2 + $0x158] sm:$0xff]
        %v393 = vld [vmem:[#allocation2 + $0x160] sm:$0xff]
        %v394 = vld [vmem:[#allocation2 + $0x168] sm:$0xff]
        %v395 = vld [vmem:[#allocation2 + $0x170] sm:$0xff]
        %v396 = vld [vmem:[#allocation2 + $0x178] sm:$0xff]
        %v397 = vld [vmem:[#allocation2 + $0x180] sm:$0xff]
        %v398 = vld [vmem:[#allocation2 + $0x188] sm:$0xff]
        %v399 = vld [vmem:[#allocation2 + $0x190] sm:$0xff]
        %v400 = vld [vmem:[#allocation2 + $0x198] sm:$0xff]
        %v401 = vld [vmem:[#allocation2 + $0x1a0] sm:$0xff]
        %v402 = vld [vmem:[#allocation2 + $0x1a8] sm:$0xff]
        %v403 = vld [vmem:[#allocation2 + $0x1b0] sm:$0xff]
        %v404 = vld [vmem:[#allocation2 + $0x1b8] sm:$0xff]
        %v405 = vld [vmem:[#allocation2 + $0x1c0] sm:$0xff]
        %v406 = vld [vmem:[#allocation2 + $0x1c8] sm:$0xff]
        %v407 = vld [vmem:[#allocation2 + $0x1d0] sm:$0xff]
        %v408 = vld [vmem:[#allocation2 + $0x1d8] sm:$0xff]
        %v409 = vld [vmem:[#allocation2 + $0x1e0] sm:$0xff]
        %v410 = vld [vmem:[#allocation2 + $0x1e8] sm:$0xff]
        %v411 = vld [vmem:[#allocation2 + $0x1f0] sm:$0xff]
        %v412 = vld [vmem:[#allocation2 + $0x1f8] sm:$0xff]
        %v413 = vld [vmem:[#allocation2 + $0x200] sm:$0xff]
        %v414 = vld [vmem:[#allocation2 + $0x208] sm:$0xff]
        %v415 = vld [vmem:[#allocation2 + $0x210] sm:$0xff]
        %v416 = vld [vmem:[#allocation2 + $0x218] sm:$0xff]
        %v417 = vld [vmem:[#allocation2 + $0x220] sm:$0xff]
        %v418 = vld [vmem:[#allocation2 + $0x228] sm:$0xff]
        %v419 = vld [vmem:[#allocation2 + $0x230] sm:$0xff]
        %v420 = vld [vmem:[#allocation2 + $0x238] sm:$0xff]
        %v421 = vld [vmem:[#allocation2 + $0x240] sm:$0xff]
        %v422 = vld [vmem:[#allocation2 + $0x248] sm:$0xff]
        %v423 = vld [vmem:[#allocation2 + $0x250] sm:$0xff]
        %v424 = vld [vmem:[#allocation2 + $0x258] sm:$0xff]
        %v425 = vld [vmem:[#allocation2 + $0x260] sm:$0xff]
        %v426 = vld [vmem:[#allocation2 + $0x268] sm:$0xff]
        %v427 = vld [vmem:[#allocation2 + $0x270] sm:$0xff]
        %v428 = vld [vmem:[#allocation2 + $0x278] sm:$0xff]
        %v429 = vld [vmem:[#allocation2 + $0x280] sm:$0xff]
        %v430 = vld [vmem:[#allocation2 + $0x288] sm:$0xff]
        %v431 = vld [vmem:[#allocation2 + $0x290] sm:$0xff]
        %v432 = vld [vmem:[#allocation2 + $0x298] sm:$0xff]
        %v433 = vld [vmem:[#allocation2 + $0x2a0] sm:$0xff]
        %v434 = vld [vmem:[#allocation2 + $0x2a8] sm:$0xff]
        %v435 = vld [vmem:[#allocation2 + $0x2b0] sm:$0xff]
        %v436 = vld [vmem:[#allocation2 + $0x2b8] sm:$0xff]
        %v437 = vld [vmem:[#allocation2 + $0x2c0] sm:$0xff]
        %v438 = vld [vmem:[#allocation2 + $0x2c8] sm:$0xff]
        %v439 = vld [vmem:[#allocation2 + $0x2d0] sm:$0xff]
        %v440 = vld [vmem:[#allocation2 + $0x2d8] sm:$0xff]
        %v441 = vld [vmem:[#allocation2 + $0x2e0] sm:$0xff]
        %v442 = vld [vmem:[#allocation2 + $0x2e8] sm:$0xff]
        %v443 = vld [vmem:[#allocation2 + $0x2f0] sm:$0xff]
        %v444 = vld [vmem:[#allocation2 + $0x2f8] sm:$0xff]
        %v445 = vld [vmem:[#allocation2 + $0x300] sm:$0xff]
        %v446 = vld [vmem:[#allocation2 + $0x308] sm:$0xff]
        %v447 = vld [vmem:[#allocation2 + $0x310] sm:$0xff]
        %v448 = vld [vmem:[#allocation2 + $0x318] sm:$0xff]
        %v449 = vld [vmem:[#allocation2 + $0x320] sm:$0xff]
        %v450 = vld [vmem:[#allocation2 + $0x328] sm:$0xff]
        %v451 = vld [vmem:[#allocation2 + $0x330] sm:$0xff]
        %v452 = vld [vmem:[#allocation2 + $0x338] sm:$0xff]
        %v453 = vld [vmem:[#allocation2 + $0x340] sm:$0xff]
        %v454 = vld [vmem:[#allocation2 + $0x348] sm:$0xff]
        %v455 = vld [vmem:[#allocation2 + $0x350] sm:$0xff]
        %v456 = vld [vmem:[#allocation2 + $0x358] sm:$0xff]
        %v457 = vld [vmem:[#allocation2 + $0x360] sm:$0xff]
        %v458 = vld [vmem:[#allocation2 + $0x368] sm:$0xff]
        %v459 = vld [vmem:[#allocation2 + $0x370] sm:$0xff]
        %v460 = vld [vmem:[#allocation2 + $0x378] sm:$0xff]
        %v461 = vld [vmem:[#allocation2 + $0x380] sm:$0xff]
        %v462 = vld [vmem:[#allocation2 + $0x388] sm:$0xff]
        %v463 = vld [vmem:[#allocation2 + $0x390] sm:$0xff]
        %v464 = vld [vmem:[#allocation2 + $0x398] sm:$0xff]
        %v465 = vld [vmem:[#allocation2 + $0x3a0] sm:$0xff]
        %v466 = vld [vmem:[#allocation2 + $0x3a8] sm:$0xff]
        %v467 = vld [vmem:[#allocation2 + $0x3b0] sm:$0xff]
        %v468 = vld [vmem:[#allocation2 + $0x3b8] sm:$0xff]
        %v469 = vld [vmem:[#allocation2 + $0x3c0] sm:$0xff]
        %v470 = vld [vmem:[#allocation2 + $0x3c8] sm:$0xff]
        %v471 = vld [vmem:[#allocation2 + $0x3d0] sm:$0xff]
        %v472 = vld [vmem:[#allocation2 + $0x3d8] sm:$0xff]
        %v473 = vld [vmem:[#allocation2 + $0x3e0] sm:$0xff]
        %v474 = vld [vmem:[#allocation2 + $0x3e8] sm:$0xff]
        %v475 = vld [vmem:[#allocation2 + $0x3f0] sm:$0xff]
        %v476 = vld [vmem:[#allocation2 + $0x3f8] sm:$0xff]
        %v477 = vld [vmem:[#allocation2 + $0x400] sm:$0xff]
        %v478 = vld [vmem:[#allocation2 + $0x408] sm:$0xff]
        %v479 = vld [vmem:[#allocation2 + $0x410] sm:$0xff]
        %v480 = vld [vmem:[#allocation2 + $0x418] sm:$0xff]
        %v481 = vld [vmem:[#allocation2 + $0x420] sm:$0xff]
        %v482 = vld [vmem:[#allocation2 + $0x428] sm:$0xff]
        %v483 = vld [vmem:[#allocation2 + $0x430] sm:$0xff]
        %v484 = vld [vmem:[#allocation2 + $0x438] sm:$0xff]
        %v485 = vld [vmem:[#allocation2 + $0x440] sm:$0xff]
        %v486 = vld [vmem:[#allocation2 + $0x448] sm:$0xff]
        %v487 = vld [vmem:[#allocation2 + $0x450] sm:$0xff]
        %v488 = vld [vmem:[#allocation2 + $0x458] sm:$0xff]
        %v489 = vld [vmem:[#allocation2 + $0x460] sm:$0xff]
        %v490 = vld [vmem:[#allocation2 + $0x468] sm:$0xff]
        %v491 = vld [vmem:[#allocation2 + $0x470] sm:$0xff]
        %v492 = vld [vmem:[#allocation2 + $0x478] sm:$0xff]
        %v493 = vld [vmem:[#allocation2 + $0x480] sm:$0xff]
        %v494 = vld [vmem:[#allocation2 + $0x488] sm:$0xff]
        %v495 = vld [vmem:[#allocation2 + $0x490] sm:$0xff]
        %v496 = vld [vmem:[#allocation2 + $0x498] sm:$0xff]
        %v497 = vld [vmem:[#allocation2 + $0x4a0] sm:$0xff]
        %v498 = vld [vmem:[#allocation2 + $0x4a8] sm:$0xff]
        %v499 = vld [vmem:[#allocation2 + $0x4b0] sm:$0xff]
        %v500 = vld [vmem:[#allocation2 + $0x4b8] sm:$0xff]
        %v501 = vld [vmem:[#allocation2 + $0x4c0] sm:$0xff]
        %v502 = vld [vmem:[#allocation2 + $0x4c8] sm:$0xff]
        %v503 = vld [vmem:[#allocation2 + $0x4d0] sm:$0xff]
        %v504 = vld [vmem:[#allocation2 + $0x4d8] sm:$0xff]
        %v505 = vld [vmem:[#allocation2 + $0x4e0] sm:$0xff]
        %v506 = vld [vmem:[#allocation2 + $0x4e8] sm:$0xff]
        %v507 = vld [vmem:[#allocation2 + $0x4f0] sm:$0xff]
        %v508 = vld [vmem:[#allocation2 + $0x4f8] sm:$0xff]
        %v509 = vld [vmem:[#allocation2 + $0x500] sm:$0xff]
        %v510 = vld [vmem:[#allocation2 + $0x508] sm:$0xff]
        %v511 = vld [vmem:[#allocation2 + $0x510] sm:$0xff]
        %v512 = vld [vmem:[#allocation2 + $0x518] sm:$0xff]
        %v513 = vld [vmem:[#allocation2 + $0x520] sm:$0xff]
        %v514 = vld [vmem:[#allocation2 + $0x528] sm:$0xff]
        %v515 = vld [vmem:[#allocation2 + $0x530] sm:$0xff]
        %v516 = vld [vmem:[#allocation2 + $0x538] sm:$0xff]
        %v517 = vld [vmem:[#allocation2 + $0x540] sm:$0xff]
        %v518 = vld [vmem:[#allocation2 + $0x548] sm:$0xff]
        %v519 = vld [vmem:[#allocation2 + $0x550] sm:$0xff]
        %v520 = vld [vmem:[#allocation2 + $0x558] sm:$0xff]
        %v521 = vld [vmem:[#allocation2 + $0x560] sm:$0xff]
        %v522 = vld [vmem:[#allocation2 + $0x568] sm:$0xff]
        %v523 = vld [vmem:[#allocation2 + $0x570] sm:$0xff]
        %v524 = vld [vmem:[#allocation2 + $0x578] sm:$0xff]
        %v525 = vld [vmem:[#allocation2 + $0x580] sm:$0xff]
        %v526 = vld [vmem:[#allocation2 + $0x588] sm:$0xff]
        %v527 = vld [vmem:[#allocation2 + $0x590] sm:$0xff]
        %v528 = vld [vmem:[#allocation2 + $0x598] sm:$0xff]
        %v529 = vld [vmem:[#allocation2 + $0x5a0] sm:$0xff]
        %v530 = vld [vmem:[#allocation2 + $0x5a8] sm:$0xff]
        %v531 = vld [vmem:[#allocation2 + $0x5b0] sm:$0xff]
        %v532 = vld [vmem:[#allocation2 + $0x5b8] sm:$0xff]
        %v533 = vld [vmem:[#allocation2 + $0x5c0] sm:$0xff]
        %v534 = vld [vmem:[#allocation2 + $0x5c8] sm:$0xff]
        %v535 = vld [vmem:[#allocation2 + $0x5d0] sm:$0xff]
        %v536 = vld [vmem:[#allocation2 + $0x5d8] sm:$0xff]
        %v537 = vld [vmem:[#allocation2 + $0x5e0] sm:$0xff]
        %v538 = vld [vmem:[#allocation2 + $0x5e8] sm:$0xff]
        %v539 = vld [vmem:[#allocation2 + $0x5f0] sm:$0xff]
        %v540 = vld [vmem:[#allocation2 + $0x5f8] sm:$0xff]
        %v541 = vld [vmem:[#allocation2 + $0x600] sm:$0xff]
        %v542 = vld [vmem:[#allocation2 + $0x608] sm:$0xff]
        %v543 = vld [vmem:[#allocation2 + $0x610] sm:$0xff]
        %v544 = vld [vmem:[#allocation2 + $0x618] sm:$0xff]
        %v545 = vld [vmem:[#allocation2 + $0x620] sm:$0xff]
        %v546 = vld [vmem:[#allocation2 + $0x628] sm:$0xff]
        %v547 = vld [vmem:[#allocation2 + $0x630] sm:$0xff]
        %v548 = vld [vmem:[#allocation2 + $0x638] sm:$0xff]
        %v549 = vld [vmem:[#allocation2 + $0x640] sm:$0xff]
        %v550 = vld [vmem:[#allocation2 + $0x648] sm:$0xff]
        %v551 = vld [vmem:[#allocation2 + $0x650] sm:$0xff]
        %v552 = vld [vmem:[#allocation2 + $0x658] sm:$0xff]
        %v553 = vld [vmem:[#allocation2 + $0x660] sm:$0xff]
        %v554 = vld [vmem:[#allocation2 + $0x668] sm:$0xff]
        %v555 = vld [vmem:[#allocation2 + $0x670] sm:$0xff]
        %v556 = vld [vmem:[#allocation2 + $0x678] sm:$0xff]
        %v557 = vld [vmem:[#allocation2 + $0x680] sm:$0xff]
        %v558 = vld [vmem:[#allocation2 + $0x688] sm:$0xff]
        %v559 = vld [vmem:[#allocation2 + $0x690] sm:$0xff]
        %v560 = vld [vmem:[#allocation2 + $0x698] sm:$0xff]
        %v561 = vld [vmem:[#allocation2 + $0x6a0] sm:$0xff]
        %v562 = vld [vmem:[#allocation2 + $0x6a8] sm:$0xff]
        %v563 = vld [vmem:[#allocation2 + $0x6b0] sm:$0xff]
        %v564 = vld [vmem:[#allocation2 + $0x6b8] sm:$0xff]
        %v565 = vld [vmem:[#allocation2 + $0x6c0] sm:$0xff]
        %v566 = vld [vmem:[#allocation2 + $0x6c8] sm:$0xff]
        %v567 = vld [vmem:[#allocation2 + $0x6d0] sm:$0xff]
        %v568 = vld [vmem:[#allocation2 + $0x6d8] sm:$0xff]
        %v569 = vld [vmem:[#allocation2 + $0x6e0] sm:$0xff]
        %v570 = vld [vmem:[#allocation2 + $0x6e8] sm:$0xff]
        %v571 = vld [vmem:[#allocation2 + $0x6f0] sm:$0xff]
        %v572 = vld [vmem:[#allocation2 + $0x6f8] sm:$0xff]
        %v573 = vld [vmem:[#allocation2 + $0x700] sm:$0xff]
        %v574 = vld [vmem:[#allocation2 + $0x708] sm:$0xff]
        %v575 = vld [vmem:[#allocation2 + $0x710] sm:$0xff]
        %v576 = vld [vmem:[#allocation2 + $0x718] sm:$0xff]
        %v577 = vld [vmem:[#allocation2 + $0x720] sm:$0xff]
        %v578 = vld [vmem:[#allocation2 + $0x728] sm:$0xff]
        %v579 = vld [vmem:[#allocation2 + $0x730] sm:$0xff]
        %v580 = vld [vmem:[#allocation2 + $0x738] sm:$0xff]
        %v581 = vld [vmem:[#allocation2 + $0x740] sm:$0xff]
        %v582 = vld [vmem:[#allocation2 + $0x748] sm:$0xff]
        %v583 = vld [vmem:[#allocation2 + $0x750] sm:$0xff]
        %v584 = vld [vmem:[#allocation2 + $0x758] sm:$0xff]
        %v585 = vld [vmem:[#allocation2 + $0x760] sm:$0xff]
        %v586 = vld [vmem:[#allocation2 + $0x768] sm:$0xff]
        %v587 = vld [vmem:[#allocation2 + $0x770] sm:$0xff]
        %v588 = vld [vmem:[#allocation2 + $0x778] sm:$0xff]
        %v589 = vld [vmem:[#allocation2 + $0x780] sm:$0xff]
        %v590 = vld [vmem:[#allocation2 + $0x788] sm:$0xff]
        %v591 = vld [vmem:[#allocation2 + $0x790] sm:$0xff]
        %v592 = vld [vmem:[#allocation2 + $0x798] sm:$0xff]
        %v593 = vld [vmem:[#allocation2 + $0x7a0] sm:$0xff]
        %v594 = vld [vmem:[#allocation2 + $0x7a8] sm:$0xff]
        %v595 = vld [vmem:[#allocation2 + $0x7b0] sm:$0xff]
        %v596 = vld [vmem:[#allocation2 + $0x7b8] sm:$0xff]
        %v597 = vld [vmem:[#allocation2 + $0x7c0] sm:$0xff]
        %v598 = vld [vmem:[#allocation2 + $0x7c8] sm:$0xff]
        %v599 = vld [vmem:[#allocation2 + $0x7d0] sm:$0xff]
        %v600 = vld [vmem:[#allocation2 + $0x7d8] sm:$0xff]
        %v601 = vld [vmem:[#allocation2 + $0x7e0] sm:$0xff]
        %v602 = vld [vmem:[#allocation2 + $0x7e8] sm:$0xff]
        %v603 = vld [vmem:[#allocation2 + $0x7f0] sm:$0xff]
        %v604 = vld [vmem:[#allocation2 + $0x7f8] sm:$0xff]
        %v605 = vld [vmem:[%s2] sm:$0xf]
        %v607 = vlaneseq
        %v608 = vshrl.u32 %v607, 7
        %v609 = vsub.s32 0, %v608
        %v610 = vrot.slane %v605, %v609
        %v611 = vlaneseq
        %v612 = vshrl.u32 %v611, 7
        %v613 = vsub.s32 1, %v612
        %v614 = vrot.slane %v605, %v613
        %v615 = vlaneseq
        %v616 = vshrl.u32 %v615, 7
        %v617 = vsub.s32 2, %v616
        %v618 = vrot.slane %v605, %v617
        %v619 = vlaneseq
        %v620 = vshrl.u32 %v619, 7
        %v621 = vsub.s32 3, %v620
        %v622 = vrot.slane %v605, %v621
        %v631 = vunpack.c.l.b16 %v345
        %v632 = vunpack.c.h.b16 %v345
        %v633 = vunpack.c.l.b16 %v346
        %v634 = vunpack.c.h.b16 %v346
        %v635 = vunpack.c.l.b16 %v347
        %v636 = vunpack.c.h.b16 %v347
        %v637 = vunpack.c.l.b16 %v348
        %v638 = vunpack.c.h.b16 %v348
        %v639 = vpack.c.b16 %v631, %v631
        %v640 = vpack.c.b16 %v632, %v632
        %v641 = vpack.c.b16 %v633, %v633
        %v642 = vpack.c.b16 %v634, %v634
        %v643 = vpack.c.b16 %v635, %v635
        %v644 = vpack.c.b16 %v636, %v636
        %v645 = vpack.c.b16 %v637, %v637
        %v646 = vpack.c.b16 %v638, %v638
        %v911 = vunpack.c.l.b16 %v349
        %v912 = vunpack.c.h.b16 %v349
        %v913 = vunpack.c.l.b16 %v350
        %v914 = vunpack.c.h.b16 %v350
        %v915 = vunpack.c.l.b16 %v351
        %v916 = vunpack.c.h.b16 %v351
        %v917 = vunpack.c.l.b16 %v352
        %v918 = vunpack.c.h.b16 %v352
        %v919 = vunpack.c.l.b16 %v353
        %v920 = vunpack.c.h.b16 %v353
        %v921 = vunpack.c.l.b16 %v354
        %v922 = vunpack.c.h.b16 %v354
        %v923 = vunpack.c.l.b16 %v355
        %v924 = vunpack.c.h.b16 %v355
        %v925 = vunpack.c.l.b16 %v356
        %v926 = vunpack.c.h.b16 %v356
        %v927 = vunpack.c.l.b16 %v357
        %v928 = vunpack.c.h.b16 %v357
        %v929 = vunpack.c.l.b16 %v358
        %v930 = vunpack.c.h.b16 %v358
        %v931 = vunpack.c.l.b16 %v359
        %v932 = vunpack.c.h.b16 %v359
        %v933 = vunpack.c.l.b16 %v360
        %v934 = vunpack.c.h.b16 %v360
        %v935 = vunpack.c.l.b16 %v361
        %v936 = vunpack.c.h.b16 %v361
        %v937 = vunpack.c.l.b16 %v362
        %v938 = vunpack.c.h.b16 %v362
        %v939 = vunpack.c.l.b16 %v363
        %v940 = vunpack.c.h.b16 %v363
        %v941 = vunpack.c.l.b16 %v364
        %v942 = vunpack.c.h.b16 %v364
        %v943 = vunpack.c.l.b16 %v365
        %v944 = vunpack.c.h.b16 %v365
        %v945 = vunpack.c.l.b16 %v366
        %v946 = vunpack.c.h.b16 %v366
        %v947 = vunpack.c.l.b16 %v367
        %v948 = vunpack.c.h.b16 %v367
        %v949 = vunpack.c.l.b16 %v368
        %v950 = vunpack.c.h.b16 %v368
        %v951 = vunpack.c.l.b16 %v369
        %v952 = vunpack.c.h.b16 %v369
        %v953 = vunpack.c.l.b16 %v370
        %v954 = vunpack.c.h.b16 %v370
        %v955 = vunpack.c.l.b16 %v371
        %v956 = vunpack.c.h.b16 %v371
        %v957 = vunpack.c.l.b16 %v372
        %v958 = vunpack.c.h.b16 %v372
        %v959 = vunpack.c.l.b16 %v373
        %v960 = vunpack.c.h.b16 %v373
        %v961 = vunpack.c.l.b16 %v374
        %v962 = vunpack.c.h.b16 %v374
        %v963 = vunpack.c.l.b16 %v375
        %v964 = vunpack.c.h.b16 %v375
        %v965 = vunpack.c.l.b16 %v376
        %v966 = vunpack.c.h.b16 %v376
        %v967 = vunpack.c.l.b16 %v377
        %v968 = vunpack.c.h.b16 %v377
        %v969 = vunpack.c.l.b16 %v378
        %v970 = vunpack.c.h.b16 %v378
        %v971 = vunpack.c.l.b16 %v379
        %v972 = vunpack.c.h.b16 %v379
        %v973 = vunpack.c.l.b16 %v380
        %v974 = vunpack.c.h.b16 %v380
        %v975 = vunpack.c.l.b16 %v381
        %v976 = vunpack.c.h.b16 %v381
        %v977 = vunpack.c.l.b16 %v382
        %v978 = vunpack.c.h.b16 %v382
        %v979 = vunpack.c.l.b16 %v383
        %v980 = vunpack.c.h.b16 %v383
        %v981 = vunpack.c.l.b16 %v384
        %v982 = vunpack.c.h.b16 %v384
        %v983 = vunpack.c.l.b16 %v385
        %v984 = vunpack.c.h.b16 %v385
        %v985 = vunpack.c.l.b16 %v386
        %v986 = vunpack.c.h.b16 %v386
        %v987 = vunpack.c.l.b16 %v387
        %v988 = vunpack.c.h.b16 %v387
        %v989 = vunpack.c.l.b16 %v388
        %v990 = vunpack.c.h.b16 %v388
        %v991 = vunpack.c.l.b16 %v389
        %v992 = vunpack.c.h.b16 %v389
        %v993 = vunpack.c.l.b16 %v390
        %v994 = vunpack.c.h.b16 %v390
        %v995 = vunpack.c.l.b16 %v391
        %v996 = vunpack.c.h.b16 %v391
        %v997 = vunpack.c.l.b16 %v392
        %v998 = vunpack.c.h.b16 %v392
        %v999 = vunpack.c.l.b16 %v393
        %v1000 = vunpack.c.h.b16 %v393
        %v1001 = vunpack.c.l.b16 %v394
        %v1002 = vunpack.c.h.b16 %v394
        %v1003 = vunpack.c.l.b16 %v395
        %v1004 = vunpack.c.h.b16 %v395
        %v1005 = vunpack.c.l.b16 %v396
        %v1006 = vunpack.c.h.b16 %v396
        %v1007 = vunpack.c.l.b16 %v397
        %v1008 = vunpack.c.h.b16 %v397
        %v1009 = vunpack.c.l.b16 %v398
        %v1010 = vunpack.c.h.b16 %v398
        %v1011 = vunpack.c.l.b16 %v399
        %v1012 = vunpack.c.h.b16 %v399
        %v1013 = vunpack.c.l.b16 %v400
        %v1014 = vunpack.c.h.b16 %v400
        %v1015 = vunpack.c.l.b16 %v401
        %v1016 = vunpack.c.h.b16 %v401
        %v1017 = vunpack.c.l.b16 %v402
        %v1018 = vunpack.c.h.b16 %v402
        %v1019 = vunpack.c.l.b16 %v403
        %v1020 = vunpack.c.h.b16 %v403
        %v1021 = vunpack.c.l.b16 %v404
        %v1022 = vunpack.c.h.b16 %v404
        %v1023 = vunpack.c.l.b16 %v405
        %v1024 = vunpack.c.h.b16 %v405
        %v1025 = vunpack.c.l.b16 %v406
        %v1026 = vunpack.c.h.b16 %v406
        %v1027 = vunpack.c.l.b16 %v407
        %v1028 = vunpack.c.h.b16 %v407
        %v1029 = vunpack.c.l.b16 %v408
        %v1030 = vunpack.c.h.b16 %v408
        %v1031 = vunpack.c.l.b16 %v409
        %v1032 = vunpack.c.h.b16 %v409
        %v1033 = vunpack.c.l.b16 %v410
        %v1034 = vunpack.c.h.b16 %v410
        %v1035 = vunpack.c.l.b16 %v411
        %v1036 = vunpack.c.h.b16 %v411
        %v1037 = vunpack.c.l.b16 %v412
        %v1038 = vunpack.c.h.b16 %v412
        %v1039 = vunpack.c.l.b16 %v413
        %v1040 = vunpack.c.h.b16 %v413
        %v1041 = vunpack.c.l.b16 %v414
        %v1042 = vunpack.c.h.b16 %v414
        %v1043 = vunpack.c.l.b16 %v415
        %v1044 = vunpack.c.h.b16 %v415
        %v1045 = vunpack.c.l.b16 %v416
        %v1046 = vunpack.c.h.b16 %v416
        %v1047 = vunpack.c.l.b16 %v417
        %v1048 = vunpack.c.h.b16 %v417
        %v1049 = vunpack.c.l.b16 %v418
        %v1050 = vunpack.c.h.b16 %v418
        %v1051 = vunpack.c.l.b16 %v419
        %v1052 = vunpack.c.h.b16 %v419
        %v1053 = vunpack.c.l.b16 %v420
        %v1054 = vunpack.c.h.b16 %v420
        %v1055 = vunpack.c.l.b16 %v421
        %v1056 = vunpack.c.h.b16 %v421
        %v1057 = vunpack.c.l.b16 %v422
        %v1058 = vunpack.c.h.b16 %v422
        %v1059 = vunpack.c.l.b16 %v423
        %v1060 = vunpack.c.h.b16 %v423
        %v1061 = vunpack.c.l.b16 %v424
        %v1062 = vunpack.c.h.b16 %v424
        %v1063 = vunpack.c.l.b16 %v425
        %v1064 = vunpack.c.h.b16 %v425
        %v1065 = vunpack.c.l.b16 %v426
        %v1066 = vunpack.c.h.b16 %v426
        %v1067 = vunpack.c.l.b16 %v427
        %v1068 = vunpack.c.h.b16 %v427
        %v1069 = vunpack.c.l.b16 %v428
        %v1070 = vunpack.c.h.b16 %v428
        %v1071 = vunpack.c.l.b16 %v429
        %v1072 = vunpack.c.h.b16 %v429
        %v1073 = vunpack.c.l.b16 %v430
        %v1074 = vunpack.c.h.b16 %v430
        %v1075 = vunpack.c.l.b16 %v431
        %v1076 = vunpack.c.h.b16 %v431
        %v1077 = vunpack.c.l.b16 %v432
        %v1078 = vunpack.c.h.b16 %v432
        %v1079 = vunpack.c.l.b16 %v433
        %v1080 = vunpack.c.h.b16 %v433
        %v1081 = vunpack.c.l.b16 %v434
        %v1082 = vunpack.c.h.b16 %v434
        %v1083 = vunpack.c.l.b16 %v435
        %v1084 = vunpack.c.h.b16 %v435
        %v1085 = vunpack.c.l.b16 %v436
        %v1086 = vunpack.c.h.b16 %v436
        %v1087 = vunpack.c.l.b16 %v437
        %v1088 = vunpack.c.h.b16 %v437
        %v1089 = vunpack.c.l.b16 %v438
        %v1090 = vunpack.c.h.b16 %v438
        %v1091 = vunpack.c.l.b16 %v439
        %v1092 = vunpack.c.h.b16 %v439
        %v1093 = vunpack.c.l.b16 %v440
        %v1094 = vunpack.c.h.b16 %v440
        %v1095 = vunpack.c.l.b16 %v441
        %v1096 = vunpack.c.h.b16 %v441
        %v1097 = vunpack.c.l.b16 %v442
        %v1098 = vunpack.c.h.b16 %v442
        %v1099 = vunpack.c.l.b16 %v443
        %v1100 = vunpack.c.h.b16 %v443
        %v1101 = vunpack.c.l.b16 %v444
        %v1102 = vunpack.c.h.b16 %v444
        %v1103 = vunpack.c.l.b16 %v445
        %v1104 = vunpack.c.h.b16 %v445
        %v1105 = vunpack.c.l.b16 %v446
        %v1106 = vunpack.c.h.b16 %v446
        %v1107 = vunpack.c.l.b16 %v447
        %v1108 = vunpack.c.h.b16 %v447
        %v1109 = vunpack.c.l.b16 %v448
        %v1110 = vunpack.c.h.b16 %v448
        %v1111 = vunpack.c.l.b16 %v449
        %v1112 = vunpack.c.h.b16 %v449
        %v1113 = vunpack.c.l.b16 %v450
        %v1114 = vunpack.c.h.b16 %v450
        %v1115 = vunpack.c.l.b16 %v451
        %v1116 = vunpack.c.h.b16 %v451
        %v1117 = vunpack.c.l.b16 %v452
        %v1118 = vunpack.c.h.b16 %v452
        %v1119 = vunpack.c.l.b16 %v453
        %v1120 = vunpack.c.h.b16 %v453
        %v1121 = vunpack.c.l.b16 %v454
        %v1122 = vunpack.c.h.b16 %v454
        %v1123 = vunpack.c.l.b16 %v455
        %v1124 = vunpack.c.h.b16 %v455
        %v1125 = vunpack.c.l.b16 %v456
        %v1126 = vunpack.c.h.b16 %v456
        %v1127 = vunpack.c.l.b16 %v457
        %v1128 = vunpack.c.h.b16 %v457
        %v1129 = vunpack.c.l.b16 %v458
        %v1130 = vunpack.c.h.b16 %v458
        %v1131 = vunpack.c.l.b16 %v459
        %v1132 = vunpack.c.h.b16 %v459
        %v1133 = vunpack.c.l.b16 %v460
        %v1134 = vunpack.c.h.b16 %v460
        %v1135 = vunpack.c.l.b16 %v461
        %v1136 = vunpack.c.h.b16 %v461
        %v1137 = vunpack.c.l.b16 %v462
        %v1138 = vunpack.c.h.b16 %v462
        %v1139 = vunpack.c.l.b16 %v463
        %v1140 = vunpack.c.h.b16 %v463
        %v1141 = vunpack.c.l.b16 %v464
        %v1142 = vunpack.c.h.b16 %v464
        %v1143 = vunpack.c.l.b16 %v465
        %v1144 = vunpack.c.h.b16 %v465
        %v1145 = vunpack.c.l.b16 %v466
        %v1146 = vunpack.c.h.b16 %v466
        %v1147 = vunpack.c.l.b16 %v467
        %v1148 = vunpack.c.h.b16 %v467
        %v1149 = vunpack.c.l.b16 %v468
        %v1150 = vunpack.c.h.b16 %v468
        %v1151 = vunpack.c.l.b16 %v469
        %v1152 = vunpack.c.h.b16 %v469
        %v1153 = vunpack.c.l.b16 %v470
        %v1154 = vunpack.c.h.b16 %v470
        %v1155 = vunpack.c.l.b16 %v471
        %v1156 = vunpack.c.h.b16 %v471
        %v1157 = vunpack.c.l.b16 %v472
        %v1158 = vunpack.c.h.b16 %v472
        %v1159 = vunpack.c.l.b16 %v473
        %v1160 = vunpack.c.h.b16 %v473
        %v1161 = vunpack.c.l.b16 %v474
        %v1162 = vunpack.c.h.b16 %v474
        %v1163 = vunpack.c.l.b16 %v475
        %v1164 = vunpack.c.h.b16 %v475
        %v1165 = vunpack.c.l.b16 %v476
        %v1166 = vunpack.c.h.b16 %v476
        %v1167 = vunpack.c.l.b16 %v477
        %v1168 = vunpack.c.h.b16 %v477
        %v1169 = vunpack.c.l.b16 %v478
        %v1170 = vunpack.c.h.b16 %v478
        %v1171 = vunpack.c.l.b16 %v479
        %v1172 = vunpack.c.h.b16 %v479
        %v1173 = vunpack.c.l.b16 %v480
        %v1174 = vunpack.c.h.b16 %v480
        %v1175 = vunpack.c.l.b16 %v481
        %v1176 = vunpack.c.h.b16 %v481
        %v1177 = vunpack.c.l.b16 %v482
        %v1178 = vunpack.c.h.b16 %v482
        %v1179 = vunpack.c.l.b16 %v483
        %v1180 = vunpack.c.h.b16 %v483
        %v1181 = vunpack.c.l.b16 %v484
        %v1182 = vunpack.c.h.b16 %v484
        %v1183 = vunpack.c.l.b16 %v485
        %v1184 = vunpack.c.h.b16 %v485
        %v1185 = vunpack.c.l.b16 %v486
        %v1186 = vunpack.c.h.b16 %v486
        %v1187 = vunpack.c.l.b16 %v487
        %v1188 = vunpack.c.h.b16 %v487
        %v1189 = vunpack.c.l.b16 %v488
        %v1190 = vunpack.c.h.b16 %v488
        %v1191 = vunpack.c.l.b16 %v489
        %v1192 = vunpack.c.h.b16 %v489
        %v1193 = vunpack.c.l.b16 %v490
        %v1194 = vunpack.c.h.b16 %v490
        %v1195 = vunpack.c.l.b16 %v491
        %v1196 = vunpack.c.h.b16 %v491
        %v1197 = vunpack.c.l.b16 %v492
        %v1198 = vunpack.c.h.b16 %v492
        %v1199 = vunpack.c.l.b16 %v493
        %v1200 = vunpack.c.h.b16 %v493
        %v1201 = vunpack.c.l.b16 %v494
        %v1202 = vunpack.c.h.b16 %v494
        %v1203 = vunpack.c.l.b16 %v495
        %v1204 = vunpack.c.h.b16 %v495
        %v1205 = vunpack.c.l.b16 %v496
        %v1206 = vunpack.c.h.b16 %v496
        %v1207 = vunpack.c.l.b16 %v497
        %v1208 = vunpack.c.h.b16 %v497
        %v1209 = vunpack.c.l.b16 %v498
        %v1210 = vunpack.c.h.b16 %v498
        %v1211 = vunpack.c.l.b16 %v499
        %v1212 = vunpack.c.h.b16 %v499
        %v1213 = vunpack.c.l.b16 %v500
        %v1214 = vunpack.c.h.b16 %v500
        %v1215 = vunpack.c.l.b16 %v501
        %v1216 = vunpack.c.h.b16 %v501
        %v1217 = vunpack.c.l.b16 %v502
        %v1218 = vunpack.c.h.b16 %v502
        %v1219 = vunpack.c.l.b16 %v503
        %v1220 = vunpack.c.h.b16 %v503
        %v1221 = vunpack.c.l.b16 %v504
        %v1222 = vunpack.c.h.b16 %v504
        %v1223 = vunpack.c.l.b16 %v505
        %v1224 = vunpack.c.h.b16 %v505
        %v1225 = vunpack.c.l.b16 %v506
        %v1226 = vunpack.c.h.b16 %v506
        %v1227 = vunpack.c.l.b16 %v507
        %v1228 = vunpack.c.h.b16 %v507
        %v1229 = vunpack.c.l.b16 %v508
        %v1230 = vunpack.c.h.b16 %v508
        %v1231 = vunpack.c.l.b16 %v509
        %v1232 = vunpack.c.h.b16 %v509
        %v1233 = vunpack.c.l.b16 %v510
        %v1234 = vunpack.c.h.b16 %v510
        %v1235 = vunpack.c.l.b16 %v511
        %v1236 = vunpack.c.h.b16 %v511
        %v1237 = vunpack.c.l.b16 %v512
        %v1238 = vunpack.c.h.b16 %v512
        %v1239 = vunpack.c.l.b16 %v513
        %v1240 = vunpack.c.h.b16 %v513
        %v1241 = vunpack.c.l.b16 %v514
        %v1242 = vunpack.c.h.b16 %v514
        %v1243 = vunpack.c.l.b16 %v515
        %v1244 = vunpack.c.h.b16 %v515
        %v1245 = vunpack.c.l.b16 %v516
        %v1246 = vunpack.c.h.b16 %v516
        %v1247 = vunpack.c.l.b16 %v517
        %v1248 = vunpack.c.h.b16 %v517
        %v1249 = vunpack.c.l.b16 %v518
        %v1250 = vunpack.c.h.b16 %v518
        %v1251 = vunpack.c.l.b16 %v519
        %v1252 = vunpack.c.h.b16 %v519
        %v1253 = vunpack.c.l.b16 %v520
        %v1254 = vunpack.c.h.b16 %v520
        %v1255 = vunpack.c.l.b16 %v521
        %v1256 = vunpack.c.h.b16 %v521
        %v1257 = vunpack.c.l.b16 %v522
        %v1258 = vunpack.c.h.b16 %v522
        %v1259 = vunpack.c.l.b16 %v523
        %v1260 = vunpack.c.h.b16 %v523
        %v1261 = vunpack.c.l.b16 %v524
        %v1262 = vunpack.c.h.b16 %v524
        %v1263 = vunpack.c.l.b16 %v525
        %v1264 = vunpack.c.h.b16 %v525
        %v1265 = vunpack.c.l.b16 %v526
        %v1266 = vunpack.c.h.b16 %v526
        %v1267 = vunpack.c.l.b16 %v527
        %v1268 = vunpack.c.h.b16 %v527
        %v1269 = vunpack.c.l.b16 %v528
        %v1270 = vunpack.c.h.b16 %v528
        %v1271 = vunpack.c.l.b16 %v529
        %v1272 = vunpack.c.h.b16 %v529
        %v1273 = vunpack.c.l.b16 %v530
        %v1274 = vunpack.c.h.b16 %v530
        %v1275 = vunpack.c.l.b16 %v531
        %v1276 = vunpack.c.h.b16 %v531
        %v1277 = vunpack.c.l.b16 %v532
        %v1278 = vunpack.c.h.b16 %v532
        %v1279 = vunpack.c.l.b16 %v533
        %v1280 = vunpack.c.h.b16 %v533
        %v1281 = vunpack.c.l.b16 %v534
        %v1282 = vunpack.c.h.b16 %v534
        %v1283 = vunpack.c.l.b16 %v535
        %v1284 = vunpack.c.h.b16 %v535
        %v1285 = vunpack.c.l.b16 %v536
        %v1286 = vunpack.c.h.b16 %v536
        %v1287 = vunpack.c.l.b16 %v537
        %v1288 = vunpack.c.h.b16 %v537
        %v1289 = vunpack.c.l.b16 %v538
        %v1290 = vunpack.c.h.b16 %v538
        %v1291 = vunpack.c.l.b16 %v539
        %v1292 = vunpack.c.h.b16 %v539
        %v1293 = vunpack.c.l.b16 %v540
        %v1294 = vunpack.c.h.b16 %v540
        %v1295 = vunpack.c.l.b16 %v541
        %v1296 = vunpack.c.h.b16 %v541
        %v1297 = vunpack.c.l.b16 %v542
        %v1298 = vunpack.c.h.b16 %v542
        %v1299 = vunpack.c.l.b16 %v543
        %v1300 = vunpack.c.h.b16 %v543
        %v1301 = vunpack.c.l.b16 %v544
        %v1302 = vunpack.c.h.b16 %v544
        %v1303 = vunpack.c.l.b16 %v545
        %v1304 = vunpack.c.h.b16 %v545
        %v1305 = vunpack.c.l.b16 %v546
        %v1306 = vunpack.c.h.b16 %v546
        %v1307 = vunpack.c.l.b16 %v547
        %v1308 = vunpack.c.h.b16 %v547
        %v1309 = vunpack.c.l.b16 %v548
        %v1310 = vunpack.c.h.b16 %v548
        %v1311 = vunpack.c.l.b16 %v549
        %v1312 = vunpack.c.h.b16 %v549
        %v1313 = vunpack.c.l.b16 %v550
        %v1314 = vunpack.c.h.b16 %v550
        %v1315 = vunpack.c.l.b16 %v551
        %v1316 = vunpack.c.h.b16 %v551
        %v1317 = vunpack.c.l.b16 %v552
        %v1318 = vunpack.c.h.b16 %v552
        %v1319 = vunpack.c.l.b16 %v553
        %v1320 = vunpack.c.h.b16 %v553
        %v1321 = vunpack.c.l.b16 %v554
        %v1322 = vunpack.c.h.b16 %v554
        %v1323 = vunpack.c.l.b16 %v555
        %v1324 = vunpack.c.h.b16 %v555
        %v1325 = vunpack.c.l.b16 %v556
        %v1326 = vunpack.c.h.b16 %v556
        %v1327 = vunpack.c.l.b16 %v557
        %v1328 = vunpack.c.h.b16 %v557
        %v1329 = vunpack.c.l.b16 %v558
        %v1330 = vunpack.c.h.b16 %v558
        %v1331 = vunpack.c.l.b16 %v559
        %v1332 = vunpack.c.h.b16 %v559
        %v1333 = vunpack.c.l.b16 %v560
        %v1334 = vunpack.c.h.b16 %v560
        %v1335 = vunpack.c.l.b16 %v561
        %v1336 = vunpack.c.h.b16 %v561
        %v1337 = vunpack.c.l.b16 %v562
        %v1338 = vunpack.c.h.b16 %v562
        %v1339 = vunpack.c.l.b16 %v563
        %v1340 = vunpack.c.h.b16 %v563
        %v1341 = vunpack.c.l.b16 %v564
        %v1342 = vunpack.c.h.b16 %v564
        %v1343 = vunpack.c.l.b16 %v565
        %v1344 = vunpack.c.h.b16 %v565
        %v1345 = vunpack.c.l.b16 %v566
        %v1346 = vunpack.c.h.b16 %v566
        %v1347 = vunpack.c.l.b16 %v567
        %v1348 = vunpack.c.h.b16 %v567
        %v1349 = vunpack.c.l.b16 %v568
        %v1350 = vunpack.c.h.b16 %v568
        %v1351 = vunpack.c.l.b16 %v569
        %v1352 = vunpack.c.h.b16 %v569
        %v1353 = vunpack.c.l.b16 %v570
        %v1354 = vunpack.c.h.b16 %v570
        %v1355 = vunpack.c.l.b16 %v571
        %v1356 = vunpack.c.h.b16 %v571
        %v1357 = vunpack.c.l.b16 %v572
        %v1358 = vunpack.c.h.b16 %v572
        %v1359 = vunpack.c.l.b16 %v573
        %v1360 = vunpack.c.h.b16 %v573
        %v1361 = vunpack.c.l.b16 %v574
        %v1362 = vunpack.c.h.b16 %v574
        %v1363 = vunpack.c.l.b16 %v575
        %v1364 = vunpack.c.h.b16 %v575
        %v1365 = vunpack.c.l.b16 %v576
        %v1366 = vunpack.c.h.b16 %v576
        %v1367 = vunpack.c.l.b16 %v577
        %v1368 = vunpack.c.h.b16 %v577
        %v1369 = vunpack.c.l.b16 %v578
        %v1370 = vunpack.c.h.b16 %v578
        %v1371 = vunpack.c.l.b16 %v579
        %v1372 = vunpack.c.h.b16 %v579
        %v1373 = vunpack.c.l.b16 %v580
        %v1374 = vunpack.c.h.b16 %v580
        %v1375 = vunpack.c.l.b16 %v581
        %v1376 = vunpack.c.h.b16 %v581
        %v1377 = vunpack.c.l.b16 %v582
        %v1378 = vunpack.c.h.b16 %v582
        %v1379 = vunpack.c.l.b16 %v583
        %v1380 = vunpack.c.h.b16 %v583
        %v1381 = vunpack.c.l.b16 %v584
        %v1382 = vunpack.c.h.b16 %v584
        %v1383 = vunpack.c.l.b16 %v585
        %v1384 = vunpack.c.h.b16 %v585
        %v1385 = vunpack.c.l.b16 %v586
        %v1386 = vunpack.c.h.b16 %v586
        %v1387 = vunpack.c.l.b16 %v587
        %v1388 = vunpack.c.h.b16 %v587
        %v1389 = vunpack.c.l.b16 %v588
        %v1390 = vunpack.c.h.b16 %v588
        %v1391 = vunpack.c.l.b16 %v589
        %v1392 = vunpack.c.h.b16 %v589
        %v1393 = vunpack.c.l.b16 %v590
        %v1394 = vunpack.c.h.b16 %v590
        %v1395 = vunpack.c.l.b16 %v591
        %v1396 = vunpack.c.h.b16 %v591
        %v1397 = vunpack.c.l.b16 %v592
        %v1398 = vunpack.c.h.b16 %v592
        %v1399 = vunpack.c.l.b16 %v593
        %v1400 = vunpack.c.h.b16 %v593
        %v1401 = vunpack.c.l.b16 %v594
        %v1402 = vunpack.c.h.b16 %v594
        %v1403 = vunpack.c.l.b16 %v595
        %v1404 = vunpack.c.h.b16 %v595
        %v1405 = vunpack.c.l.b16 %v596
        %v1406 = vunpack.c.h.b16 %v596
        %v1407 = vunpack.c.l.b16 %v597
        %v1408 = vunpack.c.h.b16 %v597
        %v1409 = vunpack.c.l.b16 %v598
        %v1410 = vunpack.c.h.b16 %v598
        %v1411 = vunpack.c.l.b16 %v599
        %v1412 = vunpack.c.h.b16 %v599
        %v1413 = vunpack.c.l.b16 %v600
        %v1414 = vunpack.c.h.b16 %v600
        %v1415 = vunpack.c.l.b16 %v601
        %v1416 = vunpack.c.h.b16 %v601
        %v1417 = vunpack.c.l.b16 %v602
        %v1418 = vunpack.c.h.b16 %v602
        %v1419 = vunpack.c.l.b16 %v603
        %v1420 = vunpack.c.h.b16 %v603
        %v1421 = vunpack.c.l.b16 %v604
        %v1422 = vunpack.c.h.b16 %v604
        %v1423 = vpack.c.b16 %v915, %v911
        %v1424 = vpack.c.b16 %v916, %v912
        %v1425 = vpack.c.b16 %v917, %v913
        %v1426 = vpack.c.b16 %v918, %v914
        %v1427 = vpack.c.b16 %v923, %v919
        %v1428 = vpack.c.b16 %v924, %v920
        %v1429 = vpack.c.b16 %v925, %v921
        %v1430 = vpack.c.b16 %v926, %v922
        %v1431 = vpack.c.b16 %v931, %v927
        %v1432 = vpack.c.b16 %v932, %v928
        %v1433 = vpack.c.b16 %v933, %v929
        %v1434 = vpack.c.b16 %v934, %v930
        %v1435 = vpack.c.b16 %v939, %v935
        %v1436 = vpack.c.b16 %v940, %v936
        %v1437 = vpack.c.b16 %v941, %v937
        %v1438 = vpack.c.b16 %v942, %v938
        %v1439 = vpack.c.b16 %v947, %v943
        %v1440 = vpack.c.b16 %v948, %v944
        %v1441 = vpack.c.b16 %v949, %v945
        %v1442 = vpack.c.b16 %v950, %v946
        %v1443 = vpack.c.b16 %v955, %v951
        %v1444 = vpack.c.b16 %v956, %v952
        %v1445 = vpack.c.b16 %v957, %v953
        %v1446 = vpack.c.b16 %v958, %v954
        %v1447 = vpack.c.b16 %v963, %v959
        %v1448 = vpack.c.b16 %v964, %v960
        %v1449 = vpack.c.b16 %v965, %v961
        %v1450 = vpack.c.b16 %v966, %v962
        %v1451 = vpack.c.b16 %v971, %v967
        %v1452 = vpack.c.b16 %v972, %v968
        %v1453 = vpack.c.b16 %v973, %v969
        %v1454 = vpack.c.b16 %v974, %v970
        %v1455 = vpack.c.b16 %v979, %v975
        %v1456 = vpack.c.b16 %v980, %v976
        %v1457 = vpack.c.b16 %v981, %v977
        %v1458 = vpack.c.b16 %v982, %v978
        %v1459 = vpack.c.b16 %v987, %v983
        %v1460 = vpack.c.b16 %v988, %v984
        %v1461 = vpack.c.b16 %v989, %v985
        %v1462 = vpack.c.b16 %v990, %v986
        %v1463 = vpack.c.b16 %v995, %v991
        %v1464 = vpack.c.b16 %v996, %v992
        %v1465 = vpack.c.b16 %v997, %v993
        %v1466 = vpack.c.b16 %v998, %v994
        %v1467 = vpack.c.b16 %v1003, %v999
        %v1468 = vpack.c.b16 %v1004, %v1000
        %v1469 = vpack.c.b16 %v1005, %v1001
        %v1470 = vpack.c.b16 %v1006, %v1002
        %v1471 = vpack.c.b16 %v1011, %v1007
        %v1472 = vpack.c.b16 %v1012, %v1008
        %v1473 = vpack.c.b16 %v1013, %v1009
        %v1474 = vpack.c.b16 %v1014, %v1010
        %v1475 = vpack.c.b16 %v1019, %v1015
        %v1476 = vpack.c.b16 %v1020, %v1016
        %v1477 = vpack.c.b16 %v1021, %v1017
        %v1478 = vpack.c.b16 %v1022, %v1018
        %v1479 = vpack.c.b16 %v1027, %v1023
        %v1480 = vpack.c.b16 %v1028, %v1024
        %v1481 = vpack.c.b16 %v1029, %v1025
        %v1482 = vpack.c.b16 %v1030, %v1026
        %v1483 = vpack.c.b16 %v1035, %v1031
        %v1484 = vpack.c.b16 %v1036, %v1032
        %v1485 = vpack.c.b16 %v1037, %v1033
        %v1486 = vpack.c.b16 %v1038, %v1034
        %v1487 = vpack.c.b16 %v1043, %v1039
        %v1488 = vpack.c.b16 %v1044, %v1040
        %v1489 = vpack.c.b16 %v1045, %v1041
        %v1490 = vpack.c.b16 %v1046, %v1042
        %v1491 = vpack.c.b16 %v1051, %v1047
        %v1492 = vpack.c.b16 %v1052, %v1048
        %v1493 = vpack.c.b16 %v1053, %v1049
        %v1494 = vpack.c.b16 %v1054, %v1050
        %v1495 = vpack.c.b16 %v1059, %v1055
        %v1496 = vpack.c.b16 %v1060, %v1056
        %v1497 = vpack.c.b16 %v1061, %v1057
        %v1498 = vpack.c.b16 %v1062, %v1058
        %v1499 = vpack.c.b16 %v1067, %v1063
        %v1500 = vpack.c.b16 %v1068, %v1064
        %v1501 = vpack.c.b16 %v1069, %v1065
        %v1502 = vpack.c.b16 %v1070, %v1066
        %v1503 = vpack.c.b16 %v1075, %v1071
        %v1504 = vpack.c.b16 %v1076, %v1072
        %v1505 = vpack.c.b16 %v1077, %v1073
        %v1506 = vpack.c.b16 %v1078, %v1074
        %v1507 = vpack.c.b16 %v1083, %v1079
        %v1508 = vpack.c.b16 %v1084, %v1080
        %v1509 = vpack.c.b16 %v1085, %v1081
        %v1510 = vpack.c.b16 %v1086, %v1082
        %v1511 = vpack.c.b16 %v1091, %v1087
        %v1512 = vpack.c.b16 %v1092, %v1088
        %v1513 = vpack.c.b16 %v1093, %v1089
        %v1514 = vpack.c.b16 %v1094, %v1090
        %v1515 = vpack.c.b16 %v1099, %v1095
        %v1516 = vpack.c.b16 %v1100, %v1096
        %v1517 = vpack.c.b16 %v1101, %v1097
        %v1518 = vpack.c.b16 %v1102, %v1098
        %v1519 = vpack.c.b16 %v1107, %v1103
        %v1520 = vpack.c.b16 %v1108, %v1104
        %v1521 = vpack.c.b16 %v1109, %v1105
        %v1522 = vpack.c.b16 %v1110, %v1106
        %v1523 = vpack.c.b16 %v1115, %v1111
        %v1524 = vpack.c.b16 %v1116, %v1112
        %v1525 = vpack.c.b16 %v1117, %v1113
        %v1526 = vpack.c.b16 %v1118, %v1114
        %v1527 = vpack.c.b16 %v1123, %v1119
        %v1528 = vpack.c.b16 %v1124, %v1120
        %v1529 = vpack.c.b16 %v1125, %v1121
        %v1530 = vpack.c.b16 %v1126, %v1122
        %v1531 = vpack.c.b16 %v1131, %v1127
        %v1532 = vpack.c.b16 %v1132, %v1128
        %v1533 = vpack.c.b16 %v1133, %v1129
        %v1534 = vpack.c.b16 %v1134, %v1130
        %v1535 = vpack.c.b16 %v1139, %v1135
        %v1536 = vpack.c.b16 %v1140, %v1136
        %v1537 = vpack.c.b16 %v1141, %v1137
        %v1538 = vpack.c.b16 %v1142, %v1138
        %v1539 = vpack.c.b16 %v1147, %v1143
        %v1540 = vpack.c.b16 %v1148, %v1144
        %v1541 = vpack.c.b16 %v1149, %v1145
        %v1542 = vpack.c.b16 %v1150, %v1146
        %v1543 = vpack.c.b16 %v1155, %v1151
        %v1544 = vpack.c.b16 %v1156, %v1152
        %v1545 = vpack.c.b16 %v1157, %v1153
        %v1546 = vpack.c.b16 %v1158, %v1154
        %v1547 = vpack.c.b16 %v1163, %v1159
        %v1548 = vpack.c.b16 %v1164, %v1160
        %v1549 = vpack.c.b16 %v1165, %v1161
        %v1550 = vpack.c.b16 %v1166, %v1162
        %v1551 = vpack.c.b16 %v1171, %v1167
        %v1552 = vpack.c.b16 %v1172, %v1168
        %v1553 = vpack.c.b16 %v1173, %v1169
        %v1554 = vpack.c.b16 %v1174, %v1170
        %v1555 = vpack.c.b16 %v1179, %v1175
        %v1556 = vpack.c.b16 %v1180, %v1176
        %v1557 = vpack.c.b16 %v1181, %v1177
        %v1558 = vpack.c.b16 %v1182, %v1178
        %v1559 = vpack.c.b16 %v1187, %v1183
        %v1560 = vpack.c.b16 %v1188, %v1184
        %v1561 = vpack.c.b16 %v1189, %v1185
        %v1562 = vpack.c.b16 %v1190, %v1186
        %v1563 = vpack.c.b16 %v1195, %v1191
        %v1564 = vpack.c.b16 %v1196, %v1192
        %v1565 = vpack.c.b16 %v1197, %v1193
        %v1566 = vpack.c.b16 %v1198, %v1194
        %v1567 = vpack.c.b16 %v1203, %v1199
        %v1568 = vpack.c.b16 %v1204, %v1200
        %v1569 = vpack.c.b16 %v1205, %v1201
        %v1570 = vpack.c.b16 %v1206, %v1202
        %v1571 = vpack.c.b16 %v1211, %v1207
        %v1572 = vpack.c.b16 %v1212, %v1208
        %v1573 = vpack.c.b16 %v1213, %v1209
        %v1574 = vpack.c.b16 %v1214, %v1210
        %v1575 = vpack.c.b16 %v1219, %v1215
        %v1576 = vpack.c.b16 %v1220, %v1216
        %v1577 = vpack.c.b16 %v1221, %v1217
        %v1578 = vpack.c.b16 %v1222, %v1218
        %v1579 = vpack.c.b16 %v1227, %v1223
        %v1580 = vpack.c.b16 %v1228, %v1224
        %v1581 = vpack.c.b16 %v1229, %v1225
        %v1582 = vpack.c.b16 %v1230, %v1226
        %v1583 = vpack.c.b16 %v1235, %v1231
        %v1584 = vpack.c.b16 %v1236, %v1232
        %v1585 = vpack.c.b16 %v1237, %v1233
        %v1586 = vpack.c.b16 %v1238, %v1234
        %v1587 = vpack.c.b16 %v1243, %v1239
        %v1588 = vpack.c.b16 %v1244, %v1240
        %v1589 = vpack.c.b16 %v1245, %v1241
        %v1590 = vpack.c.b16 %v1246, %v1242
        %v1591 = vpack.c.b16 %v1251, %v1247
        %v1592 = vpack.c.b16 %v1252, %v1248
        %v1593 = vpack.c.b16 %v1253, %v1249
        %v1594 = vpack.c.b16 %v1254, %v1250
        %v1595 = vpack.c.b16 %v1259, %v1255
        %v1596 = vpack.c.b16 %v1260, %v1256
        %v1597 = vpack.c.b16 %v1261, %v1257
        %v1598 = vpack.c.b16 %v1262, %v1258
        %v1599 = vpack.c.b16 %v1267, %v1263
        %v1600 = vpack.c.b16 %v1268, %v1264
        %v1601 = vpack.c.b16 %v1269, %v1265
        %v1602 = vpack.c.b16 %v1270, %v1266
        %v1603 = vpack.c.b16 %v1275, %v1271
        %v1604 = vpack.c.b16 %v1276, %v1272
        %v1605 = vpack.c.b16 %v1277, %v1273
        %v1606 = vpack.c.b16 %v1278, %v1274
        %v1607 = vpack.c.b16 %v1283, %v1279
        %v1608 = vpack.c.b16 %v1284, %v1280
        %v1609 = vpack.c.b16 %v1285, %v1281
        %v1610 = vpack.c.b16 %v1286, %v1282
        %v1611 = vpack.c.b16 %v1291, %v1287
        %v1612 = vpack.c.b16 %v1292, %v1288
        %v1613 = vpack.c.b16 %v1293, %v1289
        %v1614 = vpack.c.b16 %v1294, %v1290
        %v1615 = vpack.c.b16 %v1299, %v1295
        %v1616 = vpack.c.b16 %v1300, %v1296
        %v1617 = vpack.c.b16 %v1301, %v1297
        %v1618 = vpack.c.b16 %v1302, %v1298
        %v1619 = vpack.c.b16 %v1307, %v1303
        %v1620 = vpack.c.b16 %v1308, %v1304
        %v1621 = vpack.c.b16 %v1309, %v1305
        %v1622 = vpack.c.b16 %v1310, %v1306
        %v1623 = vpack.c.b16 %v1315, %v1311
        %v1624 = vpack.c.b16 %v1316, %v1312
        %v1625 = vpack.c.b16 %v1317, %v1313
        %v1626 = vpack.c.b16 %v1318, %v1314
        %v1627 = vpack.c.b16 %v1323, %v1319
        %v1628 = vpack.c.b16 %v1324, %v1320
        %v1629 = vpack.c.b16 %v1325, %v1321
        %v1630 = vpack.c.b16 %v1326, %v1322
        %v1631 = vpack.c.b16 %v1331, %v1327
        %v1632 = vpack.c.b16 %v1332, %v1328
        %v1633 = vpack.c.b16 %v1333, %v1329
        %v1634 = vpack.c.b16 %v1334, %v1330
        %v1635 = vpack.c.b16 %v1339, %v1335
        %v1636 = vpack.c.b16 %v1340, %v1336
        %v1637 = vpack.c.b16 %v1341, %v1337
        %v1638 = vpack.c.b16 %v1342, %v1338
        %v1639 = vpack.c.b16 %v1347, %v1343
        %v1640 = vpack.c.b16 %v1348, %v1344
        %v1641 = vpack.c.b16 %v1349, %v1345
        %v1642 = vpack.c.b16 %v1350, %v1346
        %v1643 = vpack.c.b16 %v1355, %v1351
        %v1644 = vpack.c.b16 %v1356, %v1352
        %v1645 = vpack.c.b16 %v1357, %v1353
        %v1646 = vpack.c.b16 %v1358, %v1354
        %v1647 = vpack.c.b16 %v1363, %v1359
        %v1648 = vpack.c.b16 %v1364, %v1360
        %v1649 = vpack.c.b16 %v1365, %v1361
        %v1650 = vpack.c.b16 %v1366, %v1362
        %v1651 = vpack.c.b16 %v1371, %v1367
        %v1652 = vpack.c.b16 %v1372, %v1368
        %v1653 = vpack.c.b16 %v1373, %v1369
        %v1654 = vpack.c.b16 %v1374, %v1370
        %v1655 = vpack.c.b16 %v1379, %v1375
        %v1656 = vpack.c.b16 %v1380, %v1376
        %v1657 = vpack.c.b16 %v1381, %v1377
        %v1658 = vpack.c.b16 %v1382, %v1378
        %v1659 = vpack.c.b16 %v1387, %v1383
        %v1660 = vpack.c.b16 %v1388, %v1384
        %v1661 = vpack.c.b16 %v1389, %v1385
        %v1662 = vpack.c.b16 %v1390, %v1386
        %v1663 = vpack.c.b16 %v1395, %v1391
        %v1664 = vpack.c.b16 %v1396, %v1392
        %v1665 = vpack.c.b16 %v1397, %v1393
        %v1666 = vpack.c.b16 %v1398, %v1394
        %v1667 = vpack.c.b16 %v1403, %v1399
        %v1668 = vpack.c.b16 %v1404, %v1400
        %v1669 = vpack.c.b16 %v1405, %v1401
        %v1670 = vpack.c.b16 %v1406, %v1402
        %v1671 = vpack.c.b16 %v1411, %v1407
        %v1672 = vpack.c.b16 %v1412, %v1408
        %v1673 = vpack.c.b16 %v1413, %v1409
        %v1674 = vpack.c.b16 %v1414, %v1410
        %v1675 = vpack.c.b16 %v1419, %v1415
        %v1676 = vpack.c.b16 %v1420, %v1416
        %v1677 = vpack.c.b16 %v1421, %v1417
        %v1678 = vpack.c.b16 %v1422, %v1418
        %1935 = vmatprep.subr.bf16.mxu0 %v1452
        %1936 = vmatpush1.bf16.msra.mxu0 %v1451
        %1937 = vmatprep.subr.bf16.mxu0 %v1448
        %1938 = vmatpush1.bf16.msra.mxu0 %v1447
        %1939 = vmatprep.subr.bf16.mxu0 %v1444
        %1940 = vmatpush1.bf16.msra.mxu0 %v1443
        %1941 = vmatprep.subr.bf16.mxu0 %v1440
        %1942 = vmatpush1.bf16.msra.mxu0 %v1439
        %1943 = vmatprep.subr.bf16.mxu0 %v1436
        %1944 = vmatpush1.bf16.msra.mxu0 %v1435
        %1945 = vmatprep.subr.bf16.mxu0 %v1432
        %1946 = vmatpush1.bf16.msra.mxu0 %v1431
        %1947 = vmatprep.subr.bf16.mxu0 %v1428
        %1948 = vmatpush1.bf16.msra.mxu0 %v1427
        %1949 = vmatprep.subr.bf16.mxu0 %v1424
        %1950 = vmatpush1.bf16.msra.mxu0 %v1423
        %1951 = vmatprep.subr.bf16.mxu0 %v1484
        %1952 = vmatpush2.bf16.msra.mxu0 %v1483
        %1953 = vmatprep.subr.bf16.mxu0 %v1480
        %1954 = vmatpush2.bf16.msra.mxu0 %v1479
        %1955 = vmatprep.subr.bf16.mxu0 %v1476
        %1956 = vmatpush2.bf16.msra.mxu0 %v1475
        %1957 = vmatprep.subr.bf16.mxu0 %v1472
        %1958 = vmatpush2.bf16.msra.mxu0 %v1471
        %1959 = vmatprep.subr.bf16.mxu0 %v1468
        %1960 = vmatpush2.bf16.msra.mxu0 %v1467
        %1961 = vmatprep.subr.bf16.mxu0 %v1464
        %1962 = vmatpush2.bf16.msra.mxu0 %v1463
        %1963 = vmatprep.subr.bf16.mxu0 %v1460
        %1964 = vmatpush2.bf16.msra.mxu0 %v1459
        %1965 = vmatprep.subr.bf16.mxu0 %v1456
        %1966 = vmatpush2.bf16.msra.mxu0 %v1455
        %1967 = vmatprep.mubr.bf16.mxu0 %v640
        %1968 = vmatmul.mubr.bf16.gmra.mxu0 %v639
        %v1969 = vpop.f32.mrf.mxu0
        %v1970 = vadd.f32 %v610, %v1969
        %v1971 = vpop.f32.mrf.mxu0
        %v1972 = vadd.f32 %v614, %v1971
        %v1973 = vpop.f32.mrf.mxu0
        %v1974 = vpop.f32.mrf.mxu0
        %1975 = vdwg.mxu0
        %1976 = vmatprep.subr.bf16.mxu0 %v1516
        %1977 = vmatpush1.bf16.msra.mxu0 %v1515
        %1978 = vmatprep.subr.bf16.mxu0 %v1512
        %1979 = vmatpush1.bf16.msra.mxu0 %v1511
        %1980 = vmatprep.subr.bf16.mxu0 %v1508
        %1981 = vmatpush1.bf16.msra.mxu0 %v1507
        %1982 = vmatprep.subr.bf16.mxu0 %v1504
        %1983 = vmatpush1.bf16.msra.mxu0 %v1503
        %1984 = vmatprep.subr.bf16.mxu0 %v1500
        %1985 = vmatpush1.bf16.msra.mxu0 %v1499
        %1986 = vmatprep.subr.bf16.mxu0 %v1496
        %1987 = vmatpush1.bf16.msra.mxu0 %v1495
        %1988 = vmatprep.subr.bf16.mxu0 %v1492
        %1989 = vmatpush1.bf16.msra.mxu0 %v1491
        %1990 = vmatprep.subr.bf16.mxu0 %v1488
        %1991 = vmatpush1.bf16.msra.mxu0 %v1487
        %1992 = vmatprep.subr.bf16.mxu0 %v1548
        %1993 = vmatpush2.bf16.msra.mxu0 %v1547
        %1994 = vmatprep.subr.bf16.mxu0 %v1544
        %1995 = vmatpush2.bf16.msra.mxu0 %v1543
        %1996 = vmatprep.subr.bf16.mxu0 %v1540
        %1997 = vmatpush2.bf16.msra.mxu0 %v1539
        %1998 = vmatprep.subr.bf16.mxu0 %v1536
        %1999 = vmatpush2.bf16.msra.mxu0 %v1535
        %2000 = vmatprep.subr.bf16.mxu0 %v1532
        %2001 = vmatpush2.bf16.msra.mxu0 %v1531
        %2002 = vmatprep.subr.bf16.mxu0 %v1528
        %2003 = vmatpush2.bf16.msra.mxu0 %v1527
        %2004 = vmatprep.subr.bf16.mxu0 %v1524
        %2005 = vmatpush2.bf16.msra.mxu0 %v1523
        %2006 = vmatprep.subr.bf16.mxu0 %v1520
        %2007 = vmatpush2.bf16.msra.mxu0 %v1519
        %2008 = vmatprep.mubr.bf16.mxu0 %v642
        %2009 = vmatmul.mubr.bf16.gmra.mxu0 %v641
        %v2010 = vpop.f32.mrf.mxu0
        %v2011 = vadd.f32 %v1970, %v2010
        %v2012 = vpop.f32.mrf.mxu0
        %v2013 = vadd.f32 %v1972, %v2012
        %v2014 = vpop.f32.mrf.mxu0
        %v2015 = vpop.f32.mrf.mxu0
        %2016 = vdwg.mxu0
        %2017 = vmatprep.subr.bf16.mxu0 %v1580
        %2018 = vmatpush1.bf16.msra.mxu0 %v1579
        %2019 = vmatprep.subr.bf16.mxu0 %v1576
        %2020 = vmatpush1.bf16.msra.mxu0 %v1575
        %2021 = vmatprep.subr.bf16.mxu0 %v1572
        %2022 = vmatpush1.bf16.msra.mxu0 %v1571
        %2023 = vmatprep.subr.bf16.mxu0 %v1568
        %2024 = vmatpush1.bf16.msra.mxu0 %v1567
        %2025 = vmatprep.subr.bf16.mxu0 %v1564
        %2026 = vmatpush1.bf16.msra.mxu0 %v1563
        %2027 = vmatprep.subr.bf16.mxu0 %v1560
        %2028 = vmatpush1.bf16.msra.mxu0 %v1559
        %2029 = vmatprep.subr.bf16.mxu0 %v1556
        %2030 = vmatpush1.bf16.msra.mxu0 %v1555
        %2031 = vmatprep.subr.bf16.mxu0 %v1552
        %2032 = vmatpush1.bf16.msra.mxu0 %v1551
        %2033 = vmatprep.subr.bf16.mxu0 %v1612
        %2034 = vmatpush2.bf16.msra.mxu0 %v1611
        %2035 = vmatprep.subr.bf16.mxu0 %v1608
        %2036 = vmatpush2.bf16.msra.mxu0 %v1607
        %2037 = vmatprep.subr.bf16.mxu0 %v1604
        %2038 = vmatpush2.bf16.msra.mxu0 %v1603
        %2039 = vmatprep.subr.bf16.mxu0 %v1600
        %2040 = vmatpush2.bf16.msra.mxu0 %v1599
        %2041 = vmatprep.subr.bf16.mxu0 %v1596
        %2042 = vmatpush2.bf16.msra.mxu0 %v1595
        %2043 = vmatprep.subr.bf16.mxu0 %v1592
        %2044 = vmatpush2.bf16.msra.mxu0 %v1591
        %2045 = vmatprep.subr.bf16.mxu0 %v1588
        %2046 = vmatpush2.bf16.msra.mxu0 %v1587
        %2047 = vmatprep.subr.bf16.mxu0 %v1584
        %2048 = vmatpush2.bf16.msra.mxu0 %v1583
        %2049 = vmatprep.mubr.bf16.mxu0 %v644
        %2050 = vmatmul.mubr.bf16.gmra.mxu0 %v643
        %v2051 = vpop.f32.mrf.mxu0
        %v2052 = vadd.f32 %v2011, %v2051
        %v2053 = vpop.f32.mrf.mxu0
        %v2054 = vadd.f32 %v2013, %v2053
        %v2055 = vpop.f32.mrf.mxu0
        %v2056 = vpop.f32.mrf.mxu0
        %2057 = vdwg.mxu0
        %2058 = vmatprep.subr.bf16.mxu0 %v1644
        %2059 = vmatpush1.bf16.msra.mxu0 %v1643
        %2060 = vmatprep.subr.bf16.mxu0 %v1640
        %2061 = vmatpush1.bf16.msra.mxu0 %v1639
        %2062 = vmatprep.subr.bf16.mxu0 %v1636
        %2063 = vmatpush1.bf16.msra.mxu0 %v1635
        %2064 = vmatprep.subr.bf16.mxu0 %v1632
        %2065 = vmatpush1.bf16.msra.mxu0 %v1631
        %2066 = vmatprep.subr.bf16.mxu0 %v1628
        %2067 = vmatpush1.bf16.msra.mxu0 %v1627
        %2068 = vmatprep.subr.bf16.mxu0 %v1624
        %2069 = vmatpush1.bf16.msra.mxu0 %v1623
        %2070 = vmatprep.subr.bf16.mxu0 %v1620
        %2071 = vmatpush1.bf16.msra.mxu0 %v1619
        %2072 = vmatprep.subr.bf16.mxu0 %v1616
        %2073 = vmatpush1.bf16.msra.mxu0 %v1615
        %2074 = vmatprep.subr.bf16.mxu0 %v1676
        %2075 = vmatpush2.bf16.msra.mxu0 %v1675
        %2076 = vmatprep.subr.bf16.mxu0 %v1672
        %2077 = vmatpush2.bf16.msra.mxu0 %v1671
        %2078 = vmatprep.subr.bf16.mxu0 %v1668
        %2079 = vmatpush2.bf16.msra.mxu0 %v1667
        %2080 = vmatprep.subr.bf16.mxu0 %v1664
        %2081 = vmatpush2.bf16.msra.mxu0 %v1663
        %2082 = vmatprep.subr.bf16.mxu0 %v1660
        %2083 = vmatpush2.bf16.msra.mxu0 %v1659
        %2084 = vmatprep.subr.bf16.mxu0 %v1656
        %2085 = vmatpush2.bf16.msra.mxu0 %v1655
        %2086 = vmatprep.subr.bf16.mxu0 %v1652
        %2087 = vmatpush2.bf16.msra.mxu0 %v1651
        %2088 = vmatprep.subr.bf16.mxu0 %v1648
        %2089 = vmatpush2.bf16.msra.mxu0 %v1647
        %2090 = vmatprep.mubr.bf16.mxu0 %v646
        %2091 = vmatmul.mubr.bf16.gmra.mxu0 %v645
        %v2092 = vpop.f32.mrf.mxu0
        %v2093 = vadd.f32 %v2052, %v2092
        %v2094 = vpop.f32.mrf.mxu0
        %v2095 = vadd.f32 %v2054, %v2094
        %v2096 = vpop.f32.mrf.mxu0
        %v2097 = vpop.f32.mrf.mxu0
        %2098 = vdwg.mxu0
        %2099 = vmatprep.subr.bf16.mxu0 %v1454
        %2100 = vmatpush1.bf16.msra.mxu0 %v1453
        %2101 = vmatprep.subr.bf16.mxu0 %v1450
        %2102 = vmatpush1.bf16.msra.mxu0 %v1449
        %2103 = vmatprep.subr.bf16.mxu0 %v1446
        %2104 = vmatpush1.bf16.msra.mxu0 %v1445
        %2105 = vmatprep.subr.bf16.mxu0 %v1442
        %2106 = vmatpush1.bf16.msra.mxu0 %v1441
        %2107 = vmatprep.subr.bf16.mxu0 %v1438
        %2108 = vmatpush1.bf16.msra.mxu0 %v1437
        %2109 = vmatprep.subr.bf16.mxu0 %v1434
        %2110 = vmatpush1.bf16.msra.mxu0 %v1433
        %2111 = vmatprep.subr.bf16.mxu0 %v1430
        %2112 = vmatpush1.bf16.msra.mxu0 %v1429
        %2113 = vmatprep.subr.bf16.mxu0 %v1426
        %2114 = vmatpush1.bf16.msra.mxu0 %v1425
        %2115 = vmatprep.subr.bf16.mxu0 %v1486
        %2116 = vmatpush2.bf16.msra.mxu0 %v1485
        %2117 = vmatprep.subr.bf16.mxu0 %v1482
        %2118 = vmatpush2.bf16.msra.mxu0 %v1481
        %2119 = vmatprep.subr.bf16.mxu0 %v1478
        %2120 = vmatpush2.bf16.msra.mxu0 %v1477
        %2121 = vmatprep.subr.bf16.mxu0 %v1474
        %2122 = vmatpush2.bf16.msra.mxu0 %v1473
        %2123 = vmatprep.subr.bf16.mxu0 %v1470
        %2124 = vmatpush2.bf16.msra.mxu0 %v1469
        %2125 = vmatprep.subr.bf16.mxu0 %v1466
        %2126 = vmatpush2.bf16.msra.mxu0 %v1465
        %2127 = vmatprep.subr.bf16.mxu0 %v1462
        %2128 = vmatpush2.bf16.msra.mxu0 %v1461
        %2129 = vmatprep.subr.bf16.mxu0 %v1458
        %2130 = vmatpush2.bf16.msra.mxu0 %v1457
        %2131 = vmatprep.mubr.bf16.mxu0 %v640
        %2132 = vmatmul.mubr.bf16.gmra.mxu0 %v639
        %v2133 = vpop.f32.mrf.mxu0
        %v2134 = vadd.f32 %v618, %v2133
        %v2135 = vpop.f32.mrf.mxu0
        %v2136 = vadd.f32 %v622, %v2135
        %v2137 = vpop.f32.mrf.mxu0
        %v2138 = vpop.f32.mrf.mxu0
        %2139 = vdwg.mxu0
        %2140 = vmatprep.subr.bf16.mxu0 %v1518
        %2141 = vmatpush1.bf16.msra.mxu0 %v1517
        %2142 = vmatprep.subr.bf16.mxu0 %v1514
        %2143 = vmatpush1.bf16.msra.mxu0 %v1513
        %2144 = vmatprep.subr.bf16.mxu0 %v1510
        %2145 = vmatpush1.bf16.msra.mxu0 %v1509
        %2146 = vmatprep.subr.bf16.mxu0 %v1506
        %2147 = vmatpush1.bf16.msra.mxu0 %v1505
        %2148 = vmatprep.subr.bf16.mxu0 %v1502
        %2149 = vmatpush1.bf16.msra.mxu0 %v1501
        %2150 = vmatprep.subr.bf16.mxu0 %v1498
        %2151 = vmatpush1.bf16.msra.mxu0 %v1497
        %2152 = vmatprep.subr.bf16.mxu0 %v1494
        %2153 = vmatpush1.bf16.msra.mxu0 %v1493
        %2154 = vmatprep.subr.bf16.mxu0 %v1490
        %2155 = vmatpush1.bf16.msra.mxu0 %v1489
        %2156 = vmatprep.subr.bf16.mxu0 %v1550
        %2157 = vmatpush2.bf16.msra.mxu0 %v1549
        %2158 = vmatprep.subr.bf16.mxu0 %v1546
        %2159 = vmatpush2.bf16.msra.mxu0 %v1545
        %2160 = vmatprep.subr.bf16.mxu0 %v1542
        %2161 = vmatpush2.bf16.msra.mxu0 %v1541
        %2162 = vmatprep.subr.bf16.mxu0 %v1538
        %2163 = vmatpush2.bf16.msra.mxu0 %v1537
        %2164 = vmatprep.subr.bf16.mxu0 %v1534
        %2165 = vmatpush2.bf16.msra.mxu0 %v1533
        %2166 = vmatprep.subr.bf16.mxu0 %v1530
        %2167 = vmatpush2.bf16.msra.mxu0 %v1529
        %2168 = vmatprep.subr.bf16.mxu0 %v1526
        %2169 = vmatpush2.bf16.msra.mxu0 %v1525
        %2170 = vmatprep.subr.bf16.mxu0 %v1522
        %2171 = vmatpush2.bf16.msra.mxu0 %v1521
        %2172 = vmatprep.mubr.bf16.mxu0 %v642
        %2173 = vmatmul.mubr.bf16.gmra.mxu0 %v641
        %v2174 = vpop.f32.mrf.mxu0
        %v2175 = vadd.f32 %v2134, %v2174
        %v2176 = vpop.f32.mrf.mxu0
        %v2177 = vadd.f32 %v2136, %v2176
        %v2178 = vpop.f32.mrf.mxu0
        %v2179 = vpop.f32.mrf.mxu0
        %2180 = vdwg.mxu0
        %2181 = vmatprep.subr.bf16.mxu0 %v1582
        %2182 = vmatpush1.bf16.msra.mxu0 %v1581
        %2183 = vmatprep.subr.bf16.mxu0 %v1578
        %2184 = vmatpush1.bf16.msra.mxu0 %v1577
        %2185 = vmatprep.subr.bf16.mxu0 %v1574
        %2186 = vmatpush1.bf16.msra.mxu0 %v1573
        %2187 = vmatprep.subr.bf16.mxu0 %v1570
        %2188 = vmatpush1.bf16.msra.mxu0 %v1569
        %2189 = vmatprep.subr.bf16.mxu0 %v1566
        %2190 = vmatpush1.bf16.msra.mxu0 %v1565
        %2191 = vmatprep.subr.bf16.mxu0 %v1562
        %2192 = vmatpush1.bf16.msra.mxu0 %v1561
        %2193 = vmatprep.subr.bf16.mxu0 %v1558
        %2194 = vmatpush1.bf16.msra.mxu0 %v1557
        %2195 = vmatprep.subr.bf16.mxu0 %v1554
        %2196 = vmatpush1.bf16.msra.mxu0 %v1553
        %2197 = vmatprep.subr.bf16.mxu0 %v1614
        %2198 = vmatpush2.bf16.msra.mxu0 %v1613
        %2199 = vmatprep.subr.bf16.mxu0 %v1610
        %2200 = vmatpush2.bf16.msra.mxu0 %v1609
        %2201 = vmatprep.subr.bf16.mxu0 %v1606
        %2202 = vmatpush2.bf16.msra.mxu0 %v1605
        %2203 = vmatprep.subr.bf16.mxu0 %v1602
        %2204 = vmatpush2.bf16.msra.mxu0 %v1601
        %2205 = vmatprep.subr.bf16.mxu0 %v1598
        %2206 = vmatpush2.bf16.msra.mxu0 %v1597
        %2207 = vmatprep.subr.bf16.mxu0 %v1594
        %2208 = vmatpush2.bf16.msra.mxu0 %v1593
        %2209 = vmatprep.subr.bf16.mxu0 %v1590
        %2210 = vmatpush2.bf16.msra.mxu0 %v1589
        %2211 = vmatprep.subr.bf16.mxu0 %v1586
        %2212 = vmatpush2.bf16.msra.mxu0 %v1585
        %2213 = vmatprep.mubr.bf16.mxu0 %v644
        %2214 = vmatmul.mubr.bf16.gmra.mxu0 %v643
        %v2215 = vpop.f32.mrf.mxu0
        %v2216 = vadd.f32 %v2175, %v2215
        %v2217 = vpop.f32.mrf.mxu0
        %v2218 = vadd.f32 %v2177, %v2217
        %v2219 = vpop.f32.mrf.mxu0
        %v2220 = vpop.f32.mrf.mxu0
        %2221 = vdwg.mxu0
        %2222 = vmatprep.subr.bf16.mxu0 %v1646
        %2223 = vmatpush1.bf16.msra.mxu0 %v1645
        %2224 = vmatprep.subr.bf16.mxu0 %v1642
        %2225 = vmatpush1.bf16.msra.mxu0 %v1641
        %2226 = vmatprep.subr.bf16.mxu0 %v1638
        %2227 = vmatpush1.bf16.msra.mxu0 %v1637
        %2228 = vmatprep.subr.bf16.mxu0 %v1634
        %2229 = vmatpush1.bf16.msra.mxu0 %v1633
        %2230 = vmatprep.subr.bf16.mxu0 %v1630
        %2231 = vmatpush1.bf16.msra.mxu0 %v1629
        %2232 = vmatprep.subr.bf16.mxu0 %v1626
        %2233 = vmatpush1.bf16.msra.mxu0 %v1625
        %2234 = vmatprep.subr.bf16.mxu0 %v1622
        %2235 = vmatpush1.bf16.msra.mxu0 %v1621
        %2236 = vmatprep.subr.bf16.mxu0 %v1618
        %2237 = vmatpush1.bf16.msra.mxu0 %v1617
        %2238 = vmatprep.subr.bf16.mxu0 %v1678
        %2239 = vmatpush2.bf16.msra.mxu0 %v1677
        %2240 = vmatprep.subr.bf16.mxu0 %v1674
        %2241 = vmatpush2.bf16.msra.mxu0 %v1673
        %2242 = vmatprep.subr.bf16.mxu0 %v1670
        %2243 = vmatpush2.bf16.msra.mxu0 %v1669
        %2244 = vmatprep.subr.bf16.mxu0 %v1666
        %2245 = vmatpush2.bf16.msra.mxu0 %v1665
        %2246 = vmatprep.subr.bf16.mxu0 %v1662
        %2247 = vmatpush2.bf16.msra.mxu0 %v1661
        %2248 = vmatprep.subr.bf16.mxu0 %v1658
        %2249 = vmatpush2.bf16.msra.mxu0 %v1657
        %2250 = vmatprep.subr.bf16.mxu0 %v1654
        %2251 = vmatpush2.bf16.msra.mxu0 %v1653
        %2252 = vmatprep.subr.bf16.mxu0 %v1650
        %2253 = vmatpush2.bf16.msra.mxu0 %v1649
        %2254 = vmatprep.mubr.bf16.mxu0 %v646
        %2255 = vmatmul.mubr.bf16.gmra.mxu0 %v645
        %v2256 = vpop.f32.mrf.mxu0
        %v2257 = vadd.f32 %v2216, %v2256
        %v2258 = vpop.f32.mrf.mxu0
        %v2259 = vadd.f32 %v2218, %v2258
        %v2260 = vpop.f32.mrf.mxu0
        %v2261 = vpop.f32.mrf.mxu0
        %2262 = vdwg.mxu0
        %v2263 = vmax.f32 %v2093, 0.0
        %v2264 = vmax.f32 %v2095, 0.0
        %v2265 = vmax.f32 %v2257, 0.0
        %v2266 = vmax.f32 %v2259, 0.0
        %v2267 = vpack.c.bf16 %v2263, %v2263
        %v2268 = vpack.c.bf16 %v2264, %v2264
        %v2269 = vpack.c.bf16 %v2265, %v2265
        %v2270 = vpack.c.bf16 %v2266, %v2266
        %v2271 = vld [vmem:[#allocation5] sm:$0xff]
        %v2272 = vld [vmem:[#allocation5 + $0x8] sm:$0xff]
        %v2273 = vld [vmem:[#allocation5 + $0x10] sm:$0xff]
        %v2274 = vld [vmem:[#allocation5 + $0x18] sm:$0xff]
        %v2275 = vld [vmem:[#allocation5 + $0x20] sm:$0xff]
        %v2276 = vld [vmem:[#allocation5 + $0x28] sm:$0xff]
        %v2277 = vld [vmem:[#allocation5 + $0x30] sm:$0xff]
        %v2278 = vld [vmem:[#allocation5 + $0x38] sm:$0xff]
        %v2279 = vld [vmem:[#allocation5 + $0x40] sm:$0xff]
        %v2280 = vld [vmem:[#allocation5 + $0x48] sm:$0xff]
        %v2281 = vld [vmem:[#allocation5 + $0x50] sm:$0xff]
        %v2282 = vld [vmem:[#allocation5 + $0x58] sm:$0xff]
        %v2283 = vld [vmem:[#allocation5 + $0x60] sm:$0xff]
        %v2284 = vld [vmem:[#allocation5 + $0x68] sm:$0xff]
        %v2285 = vld [vmem:[#allocation5 + $0x70] sm:$0xff]
        %v2286 = vld [vmem:[#allocation5 + $0x78] sm:$0xff]
        %v2287 = vld [vmem:[#allocation5 + $0x80] sm:$0xff]
        %v2288 = vld [vmem:[#allocation5 + $0x88] sm:$0xff]
        %v2289 = vld [vmem:[#allocation5 + $0x90] sm:$0xff]
        %v2290 = vld [vmem:[#allocation5 + $0x98] sm:$0xff]
        %v2291 = vld [vmem:[#allocation5 + $0xa0] sm:$0xff]
        %v2292 = vld [vmem:[#allocation5 + $0xa8] sm:$0xff]
        %v2293 = vld [vmem:[#allocation5 + $0xb0] sm:$0xff]
        %v2294 = vld [vmem:[#allocation5 + $0xb8] sm:$0xff]
        %v2295 = vld [vmem:[#allocation5 + $0xc0] sm:$0xff]
        %v2296 = vld [vmem:[#allocation5 + $0xc8] sm:$0xff]
        %v2297 = vld [vmem:[#allocation5 + $0xd0] sm:$0xff]
        %v2298 = vld [vmem:[#allocation5 + $0xd8] sm:$0xff]
        %v2299 = vld [vmem:[#allocation5 + $0xe0] sm:$0xff]
        %v2300 = vld [vmem:[#allocation5 + $0xe8] sm:$0xff]
        %v2301 = vld [vmem:[#allocation5 + $0xf0] sm:$0xff]
        %v2302 = vld [vmem:[#allocation5 + $0xf8] sm:$0xff]
        %v2303 = vld [vmem:[#allocation5 + $0x100] sm:$0xff]
        %v2304 = vld [vmem:[#allocation5 + $0x108] sm:$0xff]
        %v2305 = vld [vmem:[#allocation5 + $0x110] sm:$0xff]
        %v2306 = vld [vmem:[#allocation5 + $0x118] sm:$0xff]
        %v2307 = vld [vmem:[#allocation5 + $0x120] sm:$0xff]
        %v2308 = vld [vmem:[#allocation5 + $0x128] sm:$0xff]
        %v2309 = vld [vmem:[#allocation5 + $0x130] sm:$0xff]
        %v2310 = vld [vmem:[#allocation5 + $0x138] sm:$0xff]
        %v2311 = vld [vmem:[#allocation5 + $0x140] sm:$0xff]
        %v2312 = vld [vmem:[#allocation5 + $0x148] sm:$0xff]
        %v2313 = vld [vmem:[#allocation5 + $0x150] sm:$0xff]
        %v2314 = vld [vmem:[#allocation5 + $0x158] sm:$0xff]
        %v2315 = vld [vmem:[#allocation5 + $0x160] sm:$0xff]
        %v2316 = vld [vmem:[#allocation5 + $0x168] sm:$0xff]
        %v2317 = vld [vmem:[#allocation5 + $0x170] sm:$0xff]
        %v2318 = vld [vmem:[#allocation5 + $0x178] sm:$0xff]
        %v2319 = vld [vmem:[#allocation5 + $0x180] sm:$0xff]
        %v2320 = vld [vmem:[#allocation5 + $0x188] sm:$0xff]
        %v2321 = vld [vmem:[#allocation5 + $0x190] sm:$0xff]
        %v2322 = vld [vmem:[#allocation5 + $0x198] sm:$0xff]
        %v2323 = vld [vmem:[#allocation5 + $0x1a0] sm:$0xff]
        %v2324 = vld [vmem:[#allocation5 + $0x1a8] sm:$0xff]
        %v2325 = vld [vmem:[#allocation5 + $0x1b0] sm:$0xff]
        %v2326 = vld [vmem:[#allocation5 + $0x1b8] sm:$0xff]
        %v2327 = vld [vmem:[#allocation5 + $0x1c0] sm:$0xff]
        %v2328 = vld [vmem:[#allocation5 + $0x1c8] sm:$0xff]
        %v2329 = vld [vmem:[#allocation5 + $0x1d0] sm:$0xff]
        %v2330 = vld [vmem:[#allocation5 + $0x1d8] sm:$0xff]
        %v2331 = vld [vmem:[#allocation5 + $0x1e0] sm:$0xff]
        %v2332 = vld [vmem:[#allocation5 + $0x1e8] sm:$0xff]
        %v2333 = vld [vmem:[#allocation5 + $0x1f0] sm:$0xff]
        %v2334 = vld [vmem:[#allocation5 + $0x1f8] sm:$0xff]
        %v2335 = vld [vmem:[#allocation5 + $0x200] sm:$0xff]
        %v2336 = vld [vmem:[#allocation5 + $0x208] sm:$0xff]
        %v2337 = vld [vmem:[#allocation5 + $0x210] sm:$0xff]
        %v2338 = vld [vmem:[#allocation5 + $0x218] sm:$0xff]
        %v2339 = vld [vmem:[#allocation5 + $0x220] sm:$0xff]
        %v2340 = vld [vmem:[#allocation5 + $0x228] sm:$0xff]
        %v2341 = vld [vmem:[#allocation5 + $0x230] sm:$0xff]
        %v2342 = vld [vmem:[#allocation5 + $0x238] sm:$0xff]
        %v2343 = vld [vmem:[#allocation5 + $0x240] sm:$0xff]
        %v2344 = vld [vmem:[#allocation5 + $0x248] sm:$0xff]
        %v2345 = vld [vmem:[#allocation5 + $0x250] sm:$0xff]
        %v2346 = vld [vmem:[#allocation5 + $0x258] sm:$0xff]
        %v2347 = vld [vmem:[#allocation5 + $0x260] sm:$0xff]
        %v2348 = vld [vmem:[#allocation5 + $0x268] sm:$0xff]
        %v2349 = vld [vmem:[#allocation5 + $0x270] sm:$0xff]
        %v2350 = vld [vmem:[#allocation5 + $0x278] sm:$0xff]
        %v2351 = vld [vmem:[#allocation5 + $0x280] sm:$0xff]
        %v2352 = vld [vmem:[#allocation5 + $0x288] sm:$0xff]
        %v2353 = vld [vmem:[#allocation5 + $0x290] sm:$0xff]
        %v2354 = vld [vmem:[#allocation5 + $0x298] sm:$0xff]
        %v2355 = vld [vmem:[#allocation5 + $0x2a0] sm:$0xff]
        %v2356 = vld [vmem:[#allocation5 + $0x2a8] sm:$0xff]
        %v2357 = vld [vmem:[#allocation5 + $0x2b0] sm:$0xff]
        %v2358 = vld [vmem:[#allocation5 + $0x2b8] sm:$0xff]
        %v2359 = vld [vmem:[#allocation5 + $0x2c0] sm:$0xff]
        %v2360 = vld [vmem:[#allocation5 + $0x2c8] sm:$0xff]
        %v2361 = vld [vmem:[#allocation5 + $0x2d0] sm:$0xff]
        %v2362 = vld [vmem:[#allocation5 + $0x2d8] sm:$0xff]
        %v2363 = vld [vmem:[#allocation5 + $0x2e0] sm:$0xff]
        %v2364 = vld [vmem:[#allocation5 + $0x2e8] sm:$0xff]
        %v2365 = vld [vmem:[#allocation5 + $0x2f0] sm:$0xff]
        %v2366 = vld [vmem:[#allocation5 + $0x2f8] sm:$0xff]
        %v2367 = vld [vmem:[#allocation5 + $0x300] sm:$0xff]
        %v2368 = vld [vmem:[#allocation5 + $0x308] sm:$0xff]
        %v2369 = vld [vmem:[#allocation5 + $0x310] sm:$0xff]
        %v2370 = vld [vmem:[#allocation5 + $0x318] sm:$0xff]
        %v2371 = vld [vmem:[#allocation5 + $0x320] sm:$0xff]
        %v2372 = vld [vmem:[#allocation5 + $0x328] sm:$0xff]
        %v2373 = vld [vmem:[#allocation5 + $0x330] sm:$0xff]
        %v2374 = vld [vmem:[#allocation5 + $0x338] sm:$0xff]
        %v2375 = vld [vmem:[#allocation5 + $0x340] sm:$0xff]
        %v2376 = vld [vmem:[#allocation5 + $0x348] sm:$0xff]
        %v2377 = vld [vmem:[#allocation5 + $0x350] sm:$0xff]
        %v2378 = vld [vmem:[#allocation5 + $0x358] sm:$0xff]
        %v2379 = vld [vmem:[#allocation5 + $0x360] sm:$0xff]
        %v2380 = vld [vmem:[#allocation5 + $0x368] sm:$0xff]
        %v2381 = vld [vmem:[#allocation5 + $0x370] sm:$0xff]
        %v2382 = vld [vmem:[#allocation5 + $0x378] sm:$0xff]
        %v2383 = vld [vmem:[#allocation5 + $0x380] sm:$0xff]
        %v2384 = vld [vmem:[#allocation5 + $0x388] sm:$0xff]
        %v2385 = vld [vmem:[#allocation5 + $0x390] sm:$0xff]
        %v2386 = vld [vmem:[#allocation5 + $0x398] sm:$0xff]
        %v2387 = vld [vmem:[#allocation5 + $0x3a0] sm:$0xff]
        %v2388 = vld [vmem:[#allocation5 + $0x3a8] sm:$0xff]
        %v2389 = vld [vmem:[#allocation5 + $0x3b0] sm:$0xff]
        %v2390 = vld [vmem:[#allocation5 + $0x3b8] sm:$0xff]
        %v2391 = vld [vmem:[#allocation5 + $0x3c0] sm:$0xff]
        %v2392 = vld [vmem:[#allocation5 + $0x3c8] sm:$0xff]
        %v2393 = vld [vmem:[#allocation5 + $0x3d0] sm:$0xff]
        %v2394 = vld [vmem:[#allocation5 + $0x3d8] sm:$0xff]
        %v2395 = vld [vmem:[#allocation5 + $0x3e0] sm:$0xff]
        %v2396 = vld [vmem:[#allocation5 + $0x3e8] sm:$0xff]
        %v2397 = vld [vmem:[#allocation5 + $0x3f0] sm:$0xff]
        %v2398 = vld [vmem:[#allocation5 + $0x3f8] sm:$0xff]
        %v2399 = vld [vmem:[%s4] sm:$0xf]
        %v2401 = vlaneseq
        %v2402 = vshrl.u32 %v2401, 7
        %v2403 = vsub.s32 0, %v2402
        %v2404 = vrot.slane %v2399, %v2403
        %v2405 = vlaneseq
        %v2406 = vshrl.u32 %v2405, 7
        %v2407 = vsub.s32 1, %v2406
        %v2408 = vrot.slane %v2399, %v2407
        %v2409 = vlaneseq
        %v2410 = vshrl.u32 %v2409, 7
        %v2411 = vsub.s32 2, %v2410
        %v2412 = vrot.slane %v2399, %v2411
        %v2413 = vlaneseq
        %v2414 = vshrl.u32 %v2413, 7
        %v2415 = vsub.s32 3, %v2414
        %v2416 = vrot.slane %v2399, %v2415
        %v2549 = vunpack.c.l.b16 %v2271
        %v2550 = vunpack.c.h.b16 %v2271
        %v2551 = vunpack.c.l.b16 %v2272
        %v2552 = vunpack.c.h.b16 %v2272
        %v2553 = vunpack.c.l.b16 %v2273
        %v2554 = vunpack.c.h.b16 %v2273
        %v2555 = vunpack.c.l.b16 %v2274
        %v2556 = vunpack.c.h.b16 %v2274
        %v2557 = vunpack.c.l.b16 %v2275
        %v2558 = vunpack.c.h.b16 %v2275
        %v2559 = vunpack.c.l.b16 %v2276
        %v2560 = vunpack.c.h.b16 %v2276
        %v2561 = vunpack.c.l.b16 %v2277
        %v2562 = vunpack.c.h.b16 %v2277
        %v2563 = vunpack.c.l.b16 %v2278
        %v2564 = vunpack.c.h.b16 %v2278
        %v2565 = vunpack.c.l.b16 %v2279
        %v2566 = vunpack.c.h.b16 %v2279
        %v2567 = vunpack.c.l.b16 %v2280
        %v2568 = vunpack.c.h.b16 %v2280
        %v2569 = vunpack.c.l.b16 %v2281
        %v2570 = vunpack.c.h.b16 %v2281
        %v2571 = vunpack.c.l.b16 %v2282
        %v2572 = vunpack.c.h.b16 %v2282
        %v2573 = vunpack.c.l.b16 %v2283
        %v2574 = vunpack.c.h.b16 %v2283
        %v2575 = vunpack.c.l.b16 %v2284
        %v2576 = vunpack.c.h.b16 %v2284
        %v2577 = vunpack.c.l.b16 %v2285
        %v2578 = vunpack.c.h.b16 %v2285
        %v2579 = vunpack.c.l.b16 %v2286
        %v2580 = vunpack.c.h.b16 %v2286
        %v2581 = vunpack.c.l.b16 %v2287
        %v2582 = vunpack.c.h.b16 %v2287
        %v2583 = vunpack.c.l.b16 %v2288
        %v2584 = vunpack.c.h.b16 %v2288
        %v2585 = vunpack.c.l.b16 %v2289
        %v2586 = vunpack.c.h.b16 %v2289
        %v2587 = vunpack.c.l.b16 %v2290
        %v2588 = vunpack.c.h.b16 %v2290
        %v2589 = vunpack.c.l.b16 %v2291
        %v2590 = vunpack.c.h.b16 %v2291
        %v2591 = vunpack.c.l.b16 %v2292
        %v2592 = vunpack.c.h.b16 %v2292
        %v2593 = vunpack.c.l.b16 %v2293
        %v2594 = vunpack.c.h.b16 %v2293
        %v2595 = vunpack.c.l.b16 %v2294
        %v2596 = vunpack.c.h.b16 %v2294
        %v2597 = vunpack.c.l.b16 %v2295
        %v2598 = vunpack.c.h.b16 %v2295
        %v2599 = vunpack.c.l.b16 %v2296
        %v2600 = vunpack.c.h.b16 %v2296
        %v2601 = vunpack.c.l.b16 %v2297
        %v2602 = vunpack.c.h.b16 %v2297
        %v2603 = vunpack.c.l.b16 %v2298
        %v2604 = vunpack.c.h.b16 %v2298
        %v2605 = vunpack.c.l.b16 %v2299
        %v2606 = vunpack.c.h.b16 %v2299
        %v2607 = vunpack.c.l.b16 %v2300
        %v2608 = vunpack.c.h.b16 %v2300
        %v2609 = vunpack.c.l.b16 %v2301
        %v2610 = vunpack.c.h.b16 %v2301
        %v2611 = vunpack.c.l.b16 %v2302
        %v2612 = vunpack.c.h.b16 %v2302
        %v2613 = vunpack.c.l.b16 %v2303
        %v2614 = vunpack.c.h.b16 %v2303
        %v2615 = vunpack.c.l.b16 %v2304
        %v2616 = vunpack.c.h.b16 %v2304
        %v2617 = vunpack.c.l.b16 %v2305
        %v2618 = vunpack.c.h.b16 %v2305
        %v2619 = vunpack.c.l.b16 %v2306
        %v2620 = vunpack.c.h.b16 %v2306
        %v2621 = vunpack.c.l.b16 %v2307
        %v2622 = vunpack.c.h.b16 %v2307
        %v2623 = vunpack.c.l.b16 %v2308
        %v2624 = vunpack.c.h.b16 %v2308
        %v2625 = vunpack.c.l.b16 %v2309
        %v2626 = vunpack.c.h.b16 %v2309
        %v2627 = vunpack.c.l.b16 %v2310
        %v2628 = vunpack.c.h.b16 %v2310
        %v2629 = vunpack.c.l.b16 %v2311
        %v2630 = vunpack.c.h.b16 %v2311
        %v2631 = vunpack.c.l.b16 %v2312
        %v2632 = vunpack.c.h.b16 %v2312
        %v2633 = vunpack.c.l.b16 %v2313
        %v2634 = vunpack.c.h.b16 %v2313
        %v2635 = vunpack.c.l.b16 %v2314
        %v2636 = vunpack.c.h.b16 %v2314
        %v2637 = vunpack.c.l.b16 %v2315
        %v2638 = vunpack.c.h.b16 %v2315
        %v2639 = vunpack.c.l.b16 %v2316
        %v2640 = vunpack.c.h.b16 %v2316
        %v2641 = vunpack.c.l.b16 %v2317
        %v2642 = vunpack.c.h.b16 %v2317
        %v2643 = vunpack.c.l.b16 %v2318
        %v2644 = vunpack.c.h.b16 %v2318
        %v2645 = vunpack.c.l.b16 %v2319
        %v2646 = vunpack.c.h.b16 %v2319
        %v2647 = vunpack.c.l.b16 %v2320
        %v2648 = vunpack.c.h.b16 %v2320
        %v2649 = vunpack.c.l.b16 %v2321
        %v2650 = vunpack.c.h.b16 %v2321
        %v2651 = vunpack.c.l.b16 %v2322
        %v2652 = vunpack.c.h.b16 %v2322
        %v2653 = vunpack.c.l.b16 %v2323
        %v2654 = vunpack.c.h.b16 %v2323
        %v2655 = vunpack.c.l.b16 %v2324
        %v2656 = vunpack.c.h.b16 %v2324
        %v2657 = vunpack.c.l.b16 %v2325
        %v2658 = vunpack.c.h.b16 %v2325
        %v2659 = vunpack.c.l.b16 %v2326
        %v2660 = vunpack.c.h.b16 %v2326
        %v2661 = vunpack.c.l.b16 %v2327
        %v2662 = vunpack.c.h.b16 %v2327
        %v2663 = vunpack.c.l.b16 %v2328
        %v2664 = vunpack.c.h.b16 %v2328
        %v2665 = vunpack.c.l.b16 %v2329
        %v2666 = vunpack.c.h.b16 %v2329
        %v2667 = vunpack.c.l.b16 %v2330
        %v2668 = vunpack.c.h.b16 %v2330
        %v2669 = vunpack.c.l.b16 %v2331
        %v2670 = vunpack.c.h.b16 %v2331
        %v2671 = vunpack.c.l.b16 %v2332
        %v2672 = vunpack.c.h.b16 %v2332
        %v2673 = vunpack.c.l.b16 %v2333
        %v2674 = vunpack.c.h.b16 %v2333
        %v2675 = vunpack.c.l.b16 %v2334
        %v2676 = vunpack.c.h.b16 %v2334
        %v2677 = vunpack.c.l.b16 %v2335
        %v2678 = vunpack.c.h.b16 %v2335
        %v2679 = vunpack.c.l.b16 %v2336
        %v2680 = vunpack.c.h.b16 %v2336
        %v2681 = vunpack.c.l.b16 %v2337
        %v2682 = vunpack.c.h.b16 %v2337
        %v2683 = vunpack.c.l.b16 %v2338
        %v2684 = vunpack.c.h.b16 %v2338
        %v2685 = vunpack.c.l.b16 %v2339
        %v2686 = vunpack.c.h.b16 %v2339
        %v2687 = vunpack.c.l.b16 %v2340
        %v2688 = vunpack.c.h.b16 %v2340
        %v2689 = vunpack.c.l.b16 %v2341
        %v2690 = vunpack.c.h.b16 %v2341
        %v2691 = vunpack.c.l.b16 %v2342
        %v2692 = vunpack.c.h.b16 %v2342
        %v2693 = vunpack.c.l.b16 %v2343
        %v2694 = vunpack.c.h.b16 %v2343
        %v2695 = vunpack.c.l.b16 %v2344
        %v2696 = vunpack.c.h.b16 %v2344
        %v2697 = vunpack.c.l.b16 %v2345
        %v2698 = vunpack.c.h.b16 %v2345
        %v2699 = vunpack.c.l.b16 %v2346
        %v2700 = vunpack.c.h.b16 %v2346
        %v2701 = vunpack.c.l.b16 %v2347
        %v2702 = vunpack.c.h.b16 %v2347
        %v2703 = vunpack.c.l.b16 %v2348
        %v2704 = vunpack.c.h.b16 %v2348
        %v2705 = vunpack.c.l.b16 %v2349
        %v2706 = vunpack.c.h.b16 %v2349
        %v2707 = vunpack.c.l.b16 %v2350
        %v2708 = vunpack.c.h.b16 %v2350
        %v2709 = vunpack.c.l.b16 %v2351
        %v2710 = vunpack.c.h.b16 %v2351
        %v2711 = vunpack.c.l.b16 %v2352
        %v2712 = vunpack.c.h.b16 %v2352
        %v2713 = vunpack.c.l.b16 %v2353
        %v2714 = vunpack.c.h.b16 %v2353
        %v2715 = vunpack.c.l.b16 %v2354
        %v2716 = vunpack.c.h.b16 %v2354
        %v2717 = vunpack.c.l.b16 %v2355
        %v2718 = vunpack.c.h.b16 %v2355
        %v2719 = vunpack.c.l.b16 %v2356
        %v2720 = vunpack.c.h.b16 %v2356
        %v2721 = vunpack.c.l.b16 %v2357
        %v2722 = vunpack.c.h.b16 %v2357
        %v2723 = vunpack.c.l.b16 %v2358
        %v2724 = vunpack.c.h.b16 %v2358
        %v2725 = vunpack.c.l.b16 %v2359
        %v2726 = vunpack.c.h.b16 %v2359
        %v2727 = vunpack.c.l.b16 %v2360
        %v2728 = vunpack.c.h.b16 %v2360
        %v2729 = vunpack.c.l.b16 %v2361
        %v2730 = vunpack.c.h.b16 %v2361
        %v2731 = vunpack.c.l.b16 %v2362
        %v2732 = vunpack.c.h.b16 %v2362
        %v2733 = vunpack.c.l.b16 %v2363
        %v2734 = vunpack.c.h.b16 %v2363
        %v2735 = vunpack.c.l.b16 %v2364
        %v2736 = vunpack.c.h.b16 %v2364
        %v2737 = vunpack.c.l.b16 %v2365
        %v2738 = vunpack.c.h.b16 %v2365
        %v2739 = vunpack.c.l.b16 %v2366
        %v2740 = vunpack.c.h.b16 %v2366
        %v2741 = vunpack.c.l.b16 %v2367
        %v2742 = vunpack.c.h.b16 %v2367
        %v2743 = vunpack.c.l.b16 %v2368
        %v2744 = vunpack.c.h.b16 %v2368
        %v2745 = vunpack.c.l.b16 %v2369
        %v2746 = vunpack.c.h.b16 %v2369
        %v2747 = vunpack.c.l.b16 %v2370
        %v2748 = vunpack.c.h.b16 %v2370
        %v2749 = vunpack.c.l.b16 %v2371
        %v2750 = vunpack.c.h.b16 %v2371
        %v2751 = vunpack.c.l.b16 %v2372
        %v2752 = vunpack.c.h.b16 %v2372
        %v2753 = vunpack.c.l.b16 %v2373
        %v2754 = vunpack.c.h.b16 %v2373
        %v2755 = vunpack.c.l.b16 %v2374
        %v2756 = vunpack.c.h.b16 %v2374
        %v2757 = vunpack.c.l.b16 %v2375
        %v2758 = vunpack.c.h.b16 %v2375
        %v2759 = vunpack.c.l.b16 %v2376
        %v2760 = vunpack.c.h.b16 %v2376
        %v2761 = vunpack.c.l.b16 %v2377
        %v2762 = vunpack.c.h.b16 %v2377
        %v2763 = vunpack.c.l.b16 %v2378
        %v2764 = vunpack.c.h.b16 %v2378
        %v2765 = vunpack.c.l.b16 %v2379
        %v2766 = vunpack.c.h.b16 %v2379
        %v2767 = vunpack.c.l.b16 %v2380
        %v2768 = vunpack.c.h.b16 %v2380
        %v2769 = vunpack.c.l.b16 %v2381
        %v2770 = vunpack.c.h.b16 %v2381
        %v2771 = vunpack.c.l.b16 %v2382
        %v2772 = vunpack.c.h.b16 %v2382
        %v2773 = vunpack.c.l.b16 %v2383
        %v2774 = vunpack.c.h.b16 %v2383
        %v2775 = vunpack.c.l.b16 %v2384
        %v2776 = vunpack.c.h.b16 %v2384
        %v2777 = vunpack.c.l.b16 %v2385
        %v2778 = vunpack.c.h.b16 %v2385
        %v2779 = vunpack.c.l.b16 %v2386
        %v2780 = vunpack.c.h.b16 %v2386
        %v2781 = vunpack.c.l.b16 %v2387
        %v2782 = vunpack.c.h.b16 %v2387
        %v2783 = vunpack.c.l.b16 %v2388
        %v2784 = vunpack.c.h.b16 %v2388
        %v2785 = vunpack.c.l.b16 %v2389
        %v2786 = vunpack.c.h.b16 %v2389
        %v2787 = vunpack.c.l.b16 %v2390
        %v2788 = vunpack.c.h.b16 %v2390
        %v2789 = vunpack.c.l.b16 %v2391
        %v2790 = vunpack.c.h.b16 %v2391
        %v2791 = vunpack.c.l.b16 %v2392
        %v2792 = vunpack.c.h.b16 %v2392
        %v2793 = vunpack.c.l.b16 %v2393
        %v2794 = vunpack.c.h.b16 %v2393
        %v2795 = vunpack.c.l.b16 %v2394
        %v2796 = vunpack.c.h.b16 %v2394
        %v2797 = vunpack.c.l.b16 %v2395
        %v2798 = vunpack.c.h.b16 %v2395
        %v2799 = vunpack.c.l.b16 %v2396
        %v2800 = vunpack.c.h.b16 %v2396
        %v2801 = vunpack.c.l.b16 %v2397
        %v2802 = vunpack.c.h.b16 %v2397
        %v2803 = vunpack.c.l.b16 %v2398
        %v2804 = vunpack.c.h.b16 %v2398
        %v2805 = vpack.c.b16 %v2553, %v2549
        %v2806 = vpack.c.b16 %v2554, %v2550
        %v2807 = vpack.c.b16 %v2555, %v2551
        %v2808 = vpack.c.b16 %v2556, %v2552
        %v2809 = vpack.c.b16 %v2561, %v2557
        %v2810 = vpack.c.b16 %v2562, %v2558
        %v2811 = vpack.c.b16 %v2563, %v2559
        %v2812 = vpack.c.b16 %v2564, %v2560
        %v2813 = vpack.c.b16 %v2569, %v2565
        %v2814 = vpack.c.b16 %v2570, %v2566
        %v2815 = vpack.c.b16 %v2571, %v2567
        %v2816 = vpack.c.b16 %v2572, %v2568
        %v2817 = vpack.c.b16 %v2577, %v2573
        %v2818 = vpack.c.b16 %v2578, %v2574
        %v2819 = vpack.c.b16 %v2579, %v2575
        %v2820 = vpack.c.b16 %v2580, %v2576
        %v2821 = vpack.c.b16 %v2585, %v2581
        %v2822 = vpack.c.b16 %v2586, %v2582
        %v2823 = vpack.c.b16 %v2587, %v2583
        %v2824 = vpack.c.b16 %v2588, %v2584
        %v2825 = vpack.c.b16 %v2593, %v2589
        %v2826 = vpack.c.b16 %v2594, %v2590
        %v2827 = vpack.c.b16 %v2595, %v2591
        %v2828 = vpack.c.b16 %v2596, %v2592
        %v2829 = vpack.c.b16 %v2601, %v2597
        %v2830 = vpack.c.b16 %v2602, %v2598
        %v2831 = vpack.c.b16 %v2603, %v2599
        %v2832 = vpack.c.b16 %v2604, %v2600
        %v2833 = vpack.c.b16 %v2609, %v2605
        %v2834 = vpack.c.b16 %v2610, %v2606
        %v2835 = vpack.c.b16 %v2611, %v2607
        %v2836 = vpack.c.b16 %v2612, %v2608
        %v2837 = vpack.c.b16 %v2617, %v2613
        %v2838 = vpack.c.b16 %v2618, %v2614
        %v2839 = vpack.c.b16 %v2619, %v2615
        %v2840 = vpack.c.b16 %v2620, %v2616
        %v2841 = vpack.c.b16 %v2625, %v2621
        %v2842 = vpack.c.b16 %v2626, %v2622
        %v2843 = vpack.c.b16 %v2627, %v2623
        %v2844 = vpack.c.b16 %v2628, %v2624
        %v2845 = vpack.c.b16 %v2633, %v2629
        %v2846 = vpack.c.b16 %v2634, %v2630
        %v2847 = vpack.c.b16 %v2635, %v2631
        %v2848 = vpack.c.b16 %v2636, %v2632
        %v2849 = vpack.c.b16 %v2641, %v2637
        %v2850 = vpack.c.b16 %v2642, %v2638
        %v2851 = vpack.c.b16 %v2643, %v2639
        %v2852 = vpack.c.b16 %v2644, %v2640
        %v2853 = vpack.c.b16 %v2649, %v2645
        %v2854 = vpack.c.b16 %v2650, %v2646
        %v2855 = vpack.c.b16 %v2651, %v2647
        %v2856 = vpack.c.b16 %v2652, %v2648
        %v2857 = vpack.c.b16 %v2657, %v2653
        %v2858 = vpack.c.b16 %v2658, %v2654
        %v2859 = vpack.c.b16 %v2659, %v2655
        %v2860 = vpack.c.b16 %v2660, %v2656
        %v2861 = vpack.c.b16 %v2665, %v2661
        %v2862 = vpack.c.b16 %v2666, %v2662
        %v2863 = vpack.c.b16 %v2667, %v2663
        %v2864 = vpack.c.b16 %v2668, %v2664
        %v2865 = vpack.c.b16 %v2673, %v2669
        %v2866 = vpack.c.b16 %v2674, %v2670
        %v2867 = vpack.c.b16 %v2675, %v2671
        %v2868 = vpack.c.b16 %v2676, %v2672
        %v2869 = vpack.c.b16 %v2681, %v2677
        %v2870 = vpack.c.b16 %v2682, %v2678
        %v2871 = vpack.c.b16 %v2683, %v2679
        %v2872 = vpack.c.b16 %v2684, %v2680
        %v2873 = vpack.c.b16 %v2689, %v2685
        %v2874 = vpack.c.b16 %v2690, %v2686
        %v2875 = vpack.c.b16 %v2691, %v2687
        %v2876 = vpack.c.b16 %v2692, %v2688
        %v2877 = vpack.c.b16 %v2697, %v2693
        %v2878 = vpack.c.b16 %v2698, %v2694
        %v2879 = vpack.c.b16 %v2699, %v2695
        %v2880 = vpack.c.b16 %v2700, %v2696
        %v2881 = vpack.c.b16 %v2705, %v2701
        %v2882 = vpack.c.b16 %v2706, %v2702
        %v2883 = vpack.c.b16 %v2707, %v2703
        %v2884 = vpack.c.b16 %v2708, %v2704
        %v2885 = vpack.c.b16 %v2713, %v2709
        %v2886 = vpack.c.b16 %v2714, %v2710
        %v2887 = vpack.c.b16 %v2715, %v2711
        %v2888 = vpack.c.b16 %v2716, %v2712
        %v2889 = vpack.c.b16 %v2721, %v2717
        %v2890 = vpack.c.b16 %v2722, %v2718
        %v2891 = vpack.c.b16 %v2723, %v2719
        %v2892 = vpack.c.b16 %v2724, %v2720
        %v2893 = vpack.c.b16 %v2729, %v2725
        %v2894 = vpack.c.b16 %v2730, %v2726
        %v2895 = vpack.c.b16 %v2731, %v2727
        %v2896 = vpack.c.b16 %v2732, %v2728
        %v2897 = vpack.c.b16 %v2737, %v2733
        %v2898 = vpack.c.b16 %v2738, %v2734
        %v2899 = vpack.c.b16 %v2739, %v2735
        %v2900 = vpack.c.b16 %v2740, %v2736
        %v2901 = vpack.c.b16 %v2745, %v2741
        %v2902 = vpack.c.b16 %v2746, %v2742
        %v2903 = vpack.c.b16 %v2747, %v2743
        %v2904 = vpack.c.b16 %v2748, %v2744
        %v2905 = vpack.c.b16 %v2753, %v2749
        %v2906 = vpack.c.b16 %v2754, %v2750
        %v2907 = vpack.c.b16 %v2755, %v2751
        %v2908 = vpack.c.b16 %v2756, %v2752
        %v2909 = vpack.c.b16 %v2761, %v2757
        %v2910 = vpack.c.b16 %v2762, %v2758
        %v2911 = vpack.c.b16 %v2763, %v2759
        %v2912 = vpack.c.b16 %v2764, %v2760
        %v2913 = vpack.c.b16 %v2769, %v2765
        %v2914 = vpack.c.b16 %v2770, %v2766
        %v2915 = vpack.c.b16 %v2771, %v2767
        %v2916 = vpack.c.b16 %v2772, %v2768
        %v2917 = vpack.c.b16 %v2777, %v2773
        %v2918 = vpack.c.b16 %v2778, %v2774
        %v2919 = vpack.c.b16 %v2779, %v2775
        %v2920 = vpack.c.b16 %v2780, %v2776
        %v2921 = vpack.c.b16 %v2785, %v2781
        %v2922 = vpack.c.b16 %v2786, %v2782
        %v2923 = vpack.c.b16 %v2787, %v2783
        %v2924 = vpack.c.b16 %v2788, %v2784
        %v2925 = vpack.c.b16 %v2793, %v2789
        %v2926 = vpack.c.b16 %v2794, %v2790
        %v2927 = vpack.c.b16 %v2795, %v2791
        %v2928 = vpack.c.b16 %v2796, %v2792
        %v2929 = vpack.c.b16 %v2801, %v2797
        %v2930 = vpack.c.b16 %v2802, %v2798
        %v2931 = vpack.c.b16 %v2803, %v2799
        %v2932 = vpack.c.b16 %v2804, %v2800
        %3061 = vmatprep.subr.bf16.mxu0 %v2834
        %3062 = vmatpush1.bf16.msra.mxu0 %v2833
        %3063 = vmatprep.subr.bf16.mxu0 %v2830
        %3064 = vmatpush1.bf16.msra.mxu0 %v2829
        %3065 = vmatprep.subr.bf16.mxu0 %v2826
        %3066 = vmatpush1.bf16.msra.mxu0 %v2825
        %3067 = vmatprep.subr.bf16.mxu0 %v2822
        %3068 = vmatpush1.bf16.msra.mxu0 %v2821
        %3069 = vmatprep.subr.bf16.mxu0 %v2818
        %3070 = vmatpush1.bf16.msra.mxu0 %v2817
        %3071 = vmatprep.subr.bf16.mxu0 %v2814
        %3072 = vmatpush1.bf16.msra.mxu0 %v2813
        %3073 = vmatprep.subr.bf16.mxu0 %v2810
        %3074 = vmatpush1.bf16.msra.mxu0 %v2809
        %3075 = vmatprep.subr.bf16.mxu0 %v2806
        %3076 = vmatpush1.bf16.msra.mxu0 %v2805
        %3077 = vmatprep.subr.bf16.mxu0 %v2866
        %3078 = vmatpush2.bf16.msra.mxu0 %v2865
        %3079 = vmatprep.subr.bf16.mxu0 %v2862
        %3080 = vmatpush2.bf16.msra.mxu0 %v2861
        %3081 = vmatprep.subr.bf16.mxu0 %v2858
        %3082 = vmatpush2.bf16.msra.mxu0 %v2857
        %3083 = vmatprep.subr.bf16.mxu0 %v2854
        %3084 = vmatpush2.bf16.msra.mxu0 %v2853
        %3085 = vmatprep.subr.bf16.mxu0 %v2850
        %3086 = vmatpush2.bf16.msra.mxu0 %v2849
        %3087 = vmatprep.subr.bf16.mxu0 %v2846
        %3088 = vmatpush2.bf16.msra.mxu0 %v2845
        %3089 = vmatprep.subr.bf16.mxu0 %v2842
        %3090 = vmatpush2.bf16.msra.mxu0 %v2841
        %3091 = vmatprep.subr.bf16.mxu0 %v2838
        %3092 = vmatpush2.bf16.msra.mxu0 %v2837
        %3093 = vmatprep.mubr.bf16.mxu0 %v2268
        %3094 = vmatmul.mubr.bf16.gmra.mxu0 %v2267
        %v3095 = vpop.f32.mrf.mxu0
        %v3096 = vadd.f32 %v2404, %v3095
        %v3097 = vpop.f32.mrf.mxu0
        %v3098 = vadd.f32 %v2408, %v3097
        %v3099 = vpop.f32.mrf.mxu0
        %v3100 = vpop.f32.mrf.mxu0
        %3101 = vdwg.mxu0
        %3102 = vmatprep.subr.bf16.mxu0 %v2898
        %3103 = vmatpush1.bf16.msra.mxu0 %v2897
        %3104 = vmatprep.subr.bf16.mxu0 %v2894
        %3105 = vmatpush1.bf16.msra.mxu0 %v2893
        %3106 = vmatprep.subr.bf16.mxu0 %v2890
        %3107 = vmatpush1.bf16.msra.mxu0 %v2889
        %3108 = vmatprep.subr.bf16.mxu0 %v2886
        %3109 = vmatpush1.bf16.msra.mxu0 %v2885
        %3110 = vmatprep.subr.bf16.mxu0 %v2882
        %3111 = vmatpush1.bf16.msra.mxu0 %v2881
        %3112 = vmatprep.subr.bf16.mxu0 %v2878
        %3113 = vmatpush1.bf16.msra.mxu0 %v2877
        %3114 = vmatprep.subr.bf16.mxu0 %v2874
        %3115 = vmatpush1.bf16.msra.mxu0 %v2873
        %3116 = vmatprep.subr.bf16.mxu0 %v2870
        %3117 = vmatpush1.bf16.msra.mxu0 %v2869
        %3118 = vmatprep.subr.bf16.mxu0 %v2930
        %3119 = vmatpush2.bf16.msra.mxu0 %v2929
        %3120 = vmatprep.subr.bf16.mxu0 %v2926
        %3121 = vmatpush2.bf16.msra.mxu0 %v2925
        %3122 = vmatprep.subr.bf16.mxu0 %v2922
        %3123 = vmatpush2.bf16.msra.mxu0 %v2921
        %3124 = vmatprep.subr.bf16.mxu0 %v2918
        %3125 = vmatpush2.bf16.msra.mxu0 %v2917
        %3126 = vmatprep.subr.bf16.mxu0 %v2914
        %3127 = vmatpush2.bf16.msra.mxu0 %v2913
        %3128 = vmatprep.subr.bf16.mxu0 %v2910
        %3129 = vmatpush2.bf16.msra.mxu0 %v2909
        %3130 = vmatprep.subr.bf16.mxu0 %v2906
        %3131 = vmatpush2.bf16.msra.mxu0 %v2905
        %3132 = vmatprep.subr.bf16.mxu0 %v2902
        %3133 = vmatpush2.bf16.msra.mxu0 %v2901
        %3134 = vmatprep.mubr.bf16.mxu0 %v2270
        %3135 = vmatmul.mubr.bf16.gmra.mxu0 %v2269
        %v3136 = vpop.f32.mrf.mxu0
        %v3137 = vadd.f32 %v3096, %v3136
        %v3138 = vpop.f32.mrf.mxu0
        %v3139 = vadd.f32 %v3098, %v3138
        %v3140 = vpop.f32.mrf.mxu0
        %v3141 = vpop.f32.mrf.mxu0
        %3142 = vdwg.mxu0
        %3143 = vmatprep.subr.bf16.mxu0 %v2836
        %3144 = vmatpush1.bf16.msra.mxu0 %v2835
        %3145 = vmatprep.subr.bf16.mxu0 %v2832
        %3146 = vmatpush1.bf16.msra.mxu0 %v2831
        %3147 = vmatprep.subr.bf16.mxu0 %v2828
        %3148 = vmatpush1.bf16.msra.mxu0 %v2827
        %3149 = vmatprep.subr.bf16.mxu0 %v2824
        %3150 = vmatpush1.bf16.msra.mxu0 %v2823
        %3151 = vmatprep.subr.bf16.mxu0 %v2820
        %3152 = vmatpush1.bf16.msra.mxu0 %v2819
        %3153 = vmatprep.subr.bf16.mxu0 %v2816
        %3154 = vmatpush1.bf16.msra.mxu0 %v2815
        %3155 = vmatprep.subr.bf16.mxu0 %v2812
        %3156 = vmatpush1.bf16.msra.mxu0 %v2811
        %3157 = vmatprep.subr.bf16.mxu0 %v2808
        %3158 = vmatpush1.bf16.msra.mxu0 %v2807
        %3159 = vmatprep.subr.bf16.mxu0 %v2868
        %3160 = vmatpush2.bf16.msra.mxu0 %v2867
        %3161 = vmatprep.subr.bf16.mxu0 %v2864
        %3162 = vmatpush2.bf16.msra.mxu0 %v2863
        %3163 = vmatprep.subr.bf16.mxu0 %v2860
        %3164 = vmatpush2.bf16.msra.mxu0 %v2859
        %3165 = vmatprep.subr.bf16.mxu0 %v2856
        %3166 = vmatpush2.bf16.msra.mxu0 %v2855
        %3167 = vmatprep.subr.bf16.mxu0 %v2852
        %3168 = vmatpush2.bf16.msra.mxu0 %v2851
        %3169 = vmatprep.subr.bf16.mxu0 %v2848
        %3170 = vmatpush2.bf16.msra.mxu0 %v2847
        %3171 = vmatprep.subr.bf16.mxu0 %v2844
        %3172 = vmatpush2.bf16.msra.mxu0 %v2843
        %3173 = vmatprep.subr.bf16.mxu0 %v2840
        %3174 = vmatpush2.bf16.msra.mxu0 %v2839
        %3175 = vmatprep.mubr.bf16.mxu0 %v2268
        %3176 = vmatmul.mubr.bf16.gmra.mxu0 %v2267
        %v3177 = vpop.f32.mrf.mxu0
        %v3178 = vadd.f32 %v2412, %v3177
        %v3179 = vpop.f32.mrf.mxu0
        %v3180 = vadd.f32 %v2416, %v3179
        %v3181 = vpop.f32.mrf.mxu0
        %v3182 = vpop.f32.mrf.mxu0
        %3183 = vdwg.mxu0
        %3184 = vmatprep.subr.bf16.mxu0 %v2900
        %3185 = vmatpush1.bf16.msra.mxu0 %v2899
        %3186 = vmatprep.subr.bf16.mxu0 %v2896
        %3187 = vmatpush1.bf16.msra.mxu0 %v2895
        %3188 = vmatprep.subr.bf16.mxu0 %v2892
        %3189 = vmatpush1.bf16.msra.mxu0 %v2891
        %3190 = vmatprep.subr.bf16.mxu0 %v2888
        %3191 = vmatpush1.bf16.msra.mxu0 %v2887
        %3192 = vmatprep.subr.bf16.mxu0 %v2884
        %3193 = vmatpush1.bf16.msra.mxu0 %v2883
        %3194 = vmatprep.subr.bf16.mxu0 %v2880
        %3195 = vmatpush1.bf16.msra.mxu0 %v2879
        %3196 = vmatprep.subr.bf16.mxu0 %v2876
        %3197 = vmatpush1.bf16.msra.mxu0 %v2875
        %3198 = vmatprep.subr.bf16.mxu0 %v2872
        %3199 = vmatpush1.bf16.msra.mxu0 %v2871
        %3200 = vmatprep.subr.bf16.mxu0 %v2932
        %3201 = vmatpush2.bf16.msra.mxu0 %v2931
        %3202 = vmatprep.subr.bf16.mxu0 %v2928
        %3203 = vmatpush2.bf16.msra.mxu0 %v2927
        %3204 = vmatprep.subr.bf16.mxu0 %v2924
        %3205 = vmatpush2.bf16.msra.mxu0 %v2923
        %3206 = vmatprep.subr.bf16.mxu0 %v2920
        %3207 = vmatpush2.bf16.msra.mxu0 %v2919
        %3208 = vmatprep.subr.bf16.mxu0 %v2916
        %3209 = vmatpush2.bf16.msra.mxu0 %v2915
        %3210 = vmatprep.subr.bf16.mxu0 %v2912
        %3211 = vmatpush2.bf16.msra.mxu0 %v2911
        %3212 = vmatprep.subr.bf16.mxu0 %v2908
        %3213 = vmatpush2.bf16.msra.mxu0 %v2907
        %3214 = vmatprep.subr.bf16.mxu0 %v2904
        %3215 = vmatpush2.bf16.msra.mxu0 %v2903
        %3216 = vmatprep.mubr.bf16.mxu0 %v2270
        %3217 = vmatmul.mubr.bf16.gmra.mxu0 %v2269
        %v3218 = vpop.f32.mrf.mxu0
        %v3219 = vadd.f32 %v3178, %v3218
        %v3220 = vpop.f32.mrf.mxu0
        %v3221 = vadd.f32 %v3180, %v3220
        %v3222 = vpop.f32.mrf.mxu0
        %v3223 = vpop.f32.mrf.mxu0
        %3224 = vdwg.mxu0
        %v3225 = vmax.f32 %v3137, 0.0
        %v3226 = vmax.f32 %v3139, 0.0
        %v3227 = vmax.f32 %v3219, 0.0
        %v3228 = vmax.f32 %v3221, 0.0
        %3229 = vst [vmem:[%s332] sm:$0xff] %v3225
        %3230 = vst [vmem:[%s332 + $0x8] sm:$0xff] %v3226
        %3231 = vst [vmem:[%s332 + $0x10] sm:$0xff] %v3227
        %3232 = vst [vmem:[%s332 + $0x18] sm:$0xff] %v3228
        %v3233 = vrot.slane %v3225, 4
        %v3234 = vadd.f32 %v3225, %v3233
        %v3235 = vrot.slane %v3234, 2
        %v3236 = vadd.f32 %v3234, %v3235
        %v3237 = vrot.slane %v3236, 1
        %v3238 = vadd.f32 %v3236, %v3237
        %v3239 = vrot.slane %v3226, 4
        %v3240 = vadd.f32 %v3226, %v3239
        %v3241 = vrot.slane %v3240, 2
        %v3242 = vadd.f32 %v3240, %v3241
        %v3243 = vrot.slane %v3242, 1
        %v3244 = vadd.f32 %v3242, %v3243
        %v3245 = vrot.slane %v3227, 4
        %v3246 = vadd.f32 %v3227, %v3245
        %v3247 = vrot.slane %v3246, 2
        %v3248 = vadd.f32 %v3246, %v3247
        %v3249 = vrot.slane %v3248, 1
        %v3250 = vadd.f32 %v3248, %v3249
        %v3251 = vrot.slane %v3228, 4
        %v3252 = vadd.f32 %v3228, %v3251
        %v3253 = vrot.slane %v3252, 2
        %v3254 = vadd.f32 %v3252, %v3253
        %v3255 = vrot.slane %v3254, 1
        %v3256 = vadd.f32 %v3254, %v3255
        %v3257 = vrcp.pop 8.0
        %v3258 = vmul.f32 %v3238, %v3257
        %v3259 = vmul.f32 %v3244, %v3257
        %v3260 = vmul.f32 %v3250, %v3257
        %v3261 = vmul.f32 %v3256, %v3257
        %v3262 = vpack.c.bf16 %v3258, %v3258
        %v3263 = vpack.c.bf16 %v3259, %v3259
        %v3264 = vpack.c.bf16 %v3260, %v3260
        %v3265 = vpack.c.bf16 %v3261, %v3261
        %v3266 = vld [vmem:[%s5] sm:$0xf]
        %v3267 = vld [vmem:[%s5 + $0x4] sm:$0xf]
        %v3268 = vld [vmem:[%s5 + $0x8] sm:$0xf]
        %v3269 = vld [vmem:[%s5 + $0xc] sm:$0xf]
        %v3270 = vld [vmem:[%s5 + $0x10] sm:$0xf]
        %v3271 = vld [vmem:[%s5 + $0x14] sm:$0xf]
        %v3272 = vld [vmem:[%s5 + $0x18] sm:$0xf]
        %v3273 = vld [vmem:[%s5 + $0x1c] sm:$0xf]
        %v3274 = vld [vmem:[%s5 + $0x20] sm:$0xf]
        %v3275 = vld [vmem:[%s5 + $0x24] sm:$0xf]
        %v3276 = vld [vmem:[%s5 + $0x28] sm:$0xf]
        %v3277 = vld [vmem:[%s5 + $0x2c] sm:$0xf]
        %v3278 = vld [vmem:[%s5 + $0x30] sm:$0xf]
        %v3279 = vld [vmem:[%s5 + $0x34] sm:$0xf]
        %v3280 = vld [vmem:[%s5 + $0x38] sm:$0xf]
        %v3281 = vld [vmem:[%s5 + $0x3c] sm:$0xf]
        %v3282 = vld [vmem:[%s5 + $0x40] sm:$0xf]
        %v3283 = vld [vmem:[%s5 + $0x44] sm:$0xf]
        %v3284 = vld [vmem:[%s5 + $0x48] sm:$0xf]
        %v3285 = vld [vmem:[%s5 + $0x4c] sm:$0xf]
        %v3286 = vld [vmem:[%s5 + $0x50] sm:$0xf]
        %v3287 = vld [vmem:[%s5 + $0x54] sm:$0xf]
        %v3288 = vld [vmem:[%s5 + $0x58] sm:$0xf]
        %v3289 = vld [vmem:[%s5 + $0x5c] sm:$0xf]
        %v3290 = vld [vmem:[%s5 + $0x60] sm:$0xf]
        %v3291 = vld [vmem:[%s5 + $0x64] sm:$0xf]
        %v3292 = vld [vmem:[%s5 + $0x68] sm:$0xf]
        %v3293 = vld [vmem:[%s5 + $0x6c] sm:$0xf]
        %v3294 = vld [vmem:[%s5 + $0x70] sm:$0xf]
        %v3295 = vld [vmem:[%s5 + $0x74] sm:$0xf]
        %v3296 = vld [vmem:[%s5 + $0x78] sm:$0xf]
        %v3297 = vld [vmem:[%s5 + $0x7c] sm:$0xf]
        %v3298 = vld [vmem:[%s5 + $0x80] sm:$0xf]
        %v3299 = vld [vmem:[%s5 + $0x84] sm:$0xf]
        %v3300 = vld [vmem:[%s5 + $0x88] sm:$0xf]
        %v3301 = vld [vmem:[%s5 + $0x8c] sm:$0xf]
        %v3302 = vld [vmem:[%s5 + $0x90] sm:$0xf]
        %v3303 = vld [vmem:[%s5 + $0x94] sm:$0xf]
        %v3304 = vld [vmem:[%s5 + $0x98] sm:$0xf]
        %v3305 = vld [vmem:[%s5 + $0x9c] sm:$0xf]
        %v3306 = vld [vmem:[%s5 + $0xa0] sm:$0xf]
        %v3307 = vld [vmem:[%s5 + $0xa4] sm:$0xf]
        %v3308 = vld [vmem:[%s5 + $0xa8] sm:$0xf]
        %v3309 = vld [vmem:[%s5 + $0xac] sm:$0xf]
        %v3310 = vld [vmem:[%s5 + $0xb0] sm:$0xf]
        %v3311 = vld [vmem:[%s5 + $0xb4] sm:$0xf]
        %v3312 = vld [vmem:[%s5 + $0xb8] sm:$0xf]
        %v3313 = vld [vmem:[%s5 + $0xbc] sm:$0xf]
        %v3314 = vld [vmem:[%s5 + $0xc0] sm:$0xf]
        %v3315 = vld [vmem:[%s5 + $0xc4] sm:$0xf]
        %v3316 = vld [vmem:[%s5 + $0xc8] sm:$0xf]
        %v3317 = vld [vmem:[%s5 + $0xcc] sm:$0xf]
        %v3318 = vld [vmem:[%s5 + $0xd0] sm:$0xf]
        %v3319 = vld [vmem:[%s5 + $0xd4] sm:$0xf]
        %v3320 = vld [vmem:[%s5 + $0xd8] sm:$0xf]
        %v3321 = vld [vmem:[%s5 + $0xdc] sm:$0xf]
        %v3322 = vld [vmem:[%s5 + $0xe0] sm:$0xf]
        %v3323 = vld [vmem:[%s5 + $0xe4] sm:$0xf]
        %v3324 = vld [vmem:[%s5 + $0xe8] sm:$0xf]
        %v3325 = vld [vmem:[%s5 + $0xec] sm:$0xf]
        %v3326 = vld [vmem:[%s5 + $0xf0] sm:$0xf]
        %v3327 = vld [vmem:[%s5 + $0xf4] sm:$0xf]
        %v3328 = vld [vmem:[%s5 + $0xf8] sm:$0xf]
        %v3329 = vld [vmem:[%s5 + $0xfc] sm:$0xf]
        %v3330 = vld [vmem:[%s6] sm:$0x1]
        %v3395 = vunpack.c.l.b16 %v3266
        %v3396 = vunpack.c.l.b16 %v3267
        %v3397 = vunpack.c.l.b16 %v3268
        %v3398 = vunpack.c.l.b16 %v3269
        %v3399 = vunpack.c.l.b16 %v3270
        %v3400 = vunpack.c.l.b16 %v3271
        %v3401 = vunpack.c.l.b16 %v3272
        %v3402 = vunpack.c.l.b16 %v3273
        %v3403 = vunpack.c.l.b16 %v3274
        %v3404 = vunpack.c.l.b16 %v3275
        %v3405 = vunpack.c.l.b16 %v3276
        %v3406 = vunpack.c.l.b16 %v3277
        %v3407 = vunpack.c.l.b16 %v3278
        %v3408 = vunpack.c.l.b16 %v3279
        %v3409 = vunpack.c.l.b16 %v3280
        %v3410 = vunpack.c.l.b16 %v3281
        %v3411 = vunpack.c.l.b16 %v3282
        %v3412 = vunpack.c.l.b16 %v3283
        %v3413 = vunpack.c.l.b16 %v3284
        %v3414 = vunpack.c.l.b16 %v3285
        %v3415 = vunpack.c.l.b16 %v3286
        %v3416 = vunpack.c.l.b16 %v3287
        %v3417 = vunpack.c.l.b16 %v3288
        %v3418 = vunpack.c.l.b16 %v3289
        %v3419 = vunpack.c.l.b16 %v3290
        %v3420 = vunpack.c.l.b16 %v3291
        %v3421 = vunpack.c.l.b16 %v3292
        %v3422 = vunpack.c.l.b16 %v3293
        %v3423 = vunpack.c.l.b16 %v3294
        %v3424 = vunpack.c.l.b16 %v3295
        %v3425 = vunpack.c.l.b16 %v3296
        %v3426 = vunpack.c.l.b16 %v3297
        %v3427 = vunpack.c.l.b16 %v3298
        %v3428 = vunpack.c.l.b16 %v3299
        %v3429 = vunpack.c.l.b16 %v3300
        %v3430 = vunpack.c.l.b16 %v3301
        %v3431 = vunpack.c.l.b16 %v3302
        %v3432 = vunpack.c.l.b16 %v3303
        %v3433 = vunpack.c.l.b16 %v3304
        %v3434 = vunpack.c.l.b16 %v3305
        %v3435 = vunpack.c.l.b16 %v3306
        %v3436 = vunpack.c.l.b16 %v3307
        %v3437 = vunpack.c.l.b16 %v3308
        %v3438 = vunpack.c.l.b16 %v3309
        %v3439 = vunpack.c.l.b16 %v3310
        %v3440 = vunpack.c.l.b16 %v3311
        %v3441 = vunpack.c.l.b16 %v3312
        %v3442 = vunpack.c.l.b16 %v3313
        %v3443 = vunpack.c.l.b16 %v3314
        %v3444 = vunpack.c.l.b16 %v3315
        %v3445 = vunpack.c.l.b16 %v3316
        %v3446 = vunpack.c.l.b16 %v3317
        %v3447 = vunpack.c.l.b16 %v3318
        %v3448 = vunpack.c.l.b16 %v3319
        %v3449 = vunpack.c.l.b16 %v3320
        %v3450 = vunpack.c.l.b16 %v3321
        %v3451 = vunpack.c.l.b16 %v3322
        %v3452 = vunpack.c.l.b16 %v3323
        %v3453 = vunpack.c.l.b16 %v3324
        %v3454 = vunpack.c.l.b16 %v3325
        %v3455 = vunpack.c.l.b16 %v3326
        %v3456 = vunpack.c.l.b16 %v3327
        %v3457 = vunpack.c.l.b16 %v3328
        %v3458 = vunpack.c.l.b16 %v3329
        %v3459 = vpack.c.b16 %v3396, %v3395
        %v3460 = vpack.c.b16 %v3398, %v3397
        %v3461 = vpack.c.b16 %v3400, %v3399
        %v3462 = vpack.c.b16 %v3402, %v3401
        %v3463 = vpack.c.b16 %v3404, %v3403
        %v3464 = vpack.c.b16 %v3406, %v3405
        %v3465 = vpack.c.b16 %v3408, %v3407
        %v3466 = vpack.c.b16 %v3410, %v3409
        %v3467 = vpack.c.b16 %v3412, %v3411
        %v3468 = vpack.c.b16 %v3414, %v3413
        %v3469 = vpack.c.b16 %v3416, %v3415
        %v3470 = vpack.c.b16 %v3418, %v3417
        %v3471 = vpack.c.b16 %v3420, %v3419
        %v3472 = vpack.c.b16 %v3422, %v3421
        %v3473 = vpack.c.b16 %v3424, %v3423
        %v3474 = vpack.c.b16 %v3426, %v3425
        %v3475 = vpack.c.b16 %v3428, %v3427
        %v3476 = vpack.c.b16 %v3430, %v3429
        %v3477 = vpack.c.b16 %v3432, %v3431
        %v3478 = vpack.c.b16 %v3434, %v3433
        %v3479 = vpack.c.b16 %v3436, %v3435
        %v3480 = vpack.c.b16 %v3438, %v3437
        %v3481 = vpack.c.b16 %v3440, %v3439
        %v3482 = vpack.c.b16 %v3442, %v3441
        %v3483 = vpack.c.b16 %v3444, %v3443
        %v3484 = vpack.c.b16 %v3446, %v3445
        %v3485 = vpack.c.b16 %v3448, %v3447
        %v3486 = vpack.c.b16 %v3450, %v3449
        %v3487 = vpack.c.b16 %v3452, %v3451
        %v3488 = vpack.c.b16 %v3454, %v3453
        %v3489 = vpack.c.b16 %v3456, %v3455
        %v3490 = vpack.c.b16 %v3458, %v3457
        %3523 = vmatprep.subr.bf16.mxu0 0
        %3524 = vmatpush1.bf16.msra.mxu0 %v3466
        %3525 = vmatprep.subr.bf16.mxu0 0
        %3526 = vmatpush1.bf16.msra.mxu0 %v3465
        %3527 = vmatprep.subr.bf16.mxu0 0
        %3528 = vmatpush1.bf16.msra.mxu0 %v3464
        %3529 = vmatprep.subr.bf16.mxu0 0
        %3530 = vmatpush1.bf16.msra.mxu0 %v3463
        %3531 = vmatprep.subr.bf16.mxu0 0
        %3532 = vmatpush1.bf16.msra.mxu0 %v3462
        %3533 = vmatprep.subr.bf16.mxu0 0
        %3534 = vmatpush1.bf16.msra.mxu0 %v3461
        %3535 = vmatprep.subr.bf16.mxu0 0
        %3536 = vmatpush1.bf16.msra.mxu0 %v3460
        %3537 = vmatprep.subr.bf16.mxu0 0
        %3538 = vmatpush1.bf16.msra.mxu0 %v3459
        %3539 = vmatprep.subr.bf16.mxu0 0
        %3540 = vmatpush2.bf16.msra.mxu0 %v3474
        %3541 = vmatprep.subr.bf16.mxu0 0
        %3542 = vmatpush2.bf16.msra.mxu0 %v3473
        %3543 = vmatprep.subr.bf16.mxu0 0
        %3544 = vmatpush2.bf16.msra.mxu0 %v3472
        %3545 = vmatprep.subr.bf16.mxu0 0
        %3546 = vmatpush2.bf16.msra.mxu0 %v3471
        %3547 = vmatprep.subr.bf16.mxu0 0
        %3548 = vmatpush2.bf16.msra.mxu0 %v3470
        %3549 = vmatprep.subr.bf16.mxu0 0
        %3550 = vmatpush2.bf16.msra.mxu0 %v3469
        %3551 = vmatprep.subr.bf16.mxu0 0
        %3552 = vmatpush2.bf16.msra.mxu0 %v3468
        %3553 = vmatprep.subr.bf16.mxu0 0
        %3554 = vmatpush2.bf16.msra.mxu0 %v3467
        %3555 = vmatprep.mubr.bf16.mxu0 %v3263
        %3556 = vmatmul.mubr.bf16.gmra.mxu0 %v3262
        %v3557 = vpop.f32.mrf.mxu0
        %v3558 = vadd.f32 %v3330, %v3557
        %v3559 = vpop.f32.mrf.mxu0
        %v3560 = vpop.f32.mrf.mxu0
        %v3561 = vpop.f32.mrf.mxu0
        %3562 = vdwg.mxu0
        %3563 = vmatprep.subr.bf16.mxu0 0
        %3564 = vmatpush1.bf16.msra.mxu0 %v3482
        %3565 = vmatprep.subr.bf16.mxu0 0
        %3566 = vmatpush1.bf16.msra.mxu0 %v3481
        %3567 = vmatprep.subr.bf16.mxu0 0
        %3568 = vmatpush1.bf16.msra.mxu0 %v3480
        %3569 = vmatprep.subr.bf16.mxu0 0
        %3570 = vmatpush1.bf16.msra.mxu0 %v3479
        %3571 = vmatprep.subr.bf16.mxu0 0
        %3572 = vmatpush1.bf16.msra.mxu0 %v3478
        %3573 = vmatprep.subr.bf16.mxu0 0
        %3574 = vmatpush1.bf16.msra.mxu0 %v3477
        %3575 = vmatprep.subr.bf16.mxu0 0
        %3576 = vmatpush1.bf16.msra.mxu0 %v3476
        %3577 = vmatprep.subr.bf16.mxu0 0
        %3578 = vmatpush1.bf16.msra.mxu0 %v3475
        %3579 = vmatprep.subr.bf16.mxu0 0
        %3580 = vmatpush2.bf16.msra.mxu0 %v3490
        %3581 = vmatprep.subr.bf16.mxu0 0
        %3582 = vmatpush2.bf16.msra.mxu0 %v3489
        %3583 = vmatprep.subr.bf16.mxu0 0
        %3584 = vmatpush2.bf16.msra.mxu0 %v3488
        %3585 = vmatprep.subr.bf16.mxu0 0
        %3586 = vmatpush2.bf16.msra.mxu0 %v3487
        %3587 = vmatprep.subr.bf16.mxu0 0
        %3588 = vmatpush2.bf16.msra.mxu0 %v3486
        %3589 = vmatprep.subr.bf16.mxu0 0
        %3590 = vmatpush2.bf16.msra.mxu0 %v3485
        %3591 = vmatprep.subr.bf16.mxu0 0
        %3592 = vmatpush2.bf16.msra.mxu0 %v3484
        %3593 = vmatprep.subr.bf16.mxu0 0
        %3594 = vmatpush2.bf16.msra.mxu0 %v3483
        %3595 = vmatprep.mubr.bf16.mxu0 %v3265
        %3596 = vmatmul.mubr.bf16.gmra.mxu0 %v3264
        %v3597 = vpop.f32.mrf.mxu0
        %v3598 = vadd.f32 %v3558, %v3597
        %v3599 = vpop.f32.mrf.mxu0
        %v3600 = vpop.f32.mrf.mxu0
        %v3601 = vpop.f32.mrf.mxu0
        %3602 = vdwg.mxu0
        %vm3603 = vcmask 57344
        %3604 = vst.msk [vmem:[%s338] sm:$0x1] %vm3603, %v3598
        %s3605 = sand.u32 %s188, 1
        %s3606 = scalar_lea.sflag [#allocation4], %s3605
        %s3607 = sand.u32 %s188, 1
        %s3608 = smul.addr %s3607, 32
        %s3609 = scalar_lea.vmem [#allocation7], %s3608
        %s3610 = sand.u32 %s214, 1
        %s3611 = scalar_lea.sflag [#allocation9], %s3610
        %s3612 = sand.u32 %s214, 1
        %s3613 = scalar_lea.vmem [#allocation8], %s3612
        // Predicated region
        $region57: #{tpu_custom_call.1} parent=47 // pred_check
          %p3614 = pneg %p198
        $region58: #{tpu_custom_call.1} parent=47 // pred_check_branch
          %3616 = sbr.rel (%p3614) target = $region60
        $region59: #{tpu_custom_call.1} parent=47 // pred_region
          %s3618 = ssub.s32 512, 512
          %3619 = vsyncadd %s3606, %s3618
          %s3620 = smul.addr %s28, 4
          %s3621 = smul.addr %s3620, 128
          %s3622 = scalar_lea.hbm %s7, %s3621
          %s3624 = sshll.u32 %s3609, 4
          %s3625 = int_to_ptr.vmem [resolvable:$true] %s3624
          %3627 = dma.vmem_to_hbm [thread:$0]  %s3625, 512, %s3622, %s3606
        $region60: #{tpu_custom_call.1} parent=47 // pred_fallthru
          _
        // Predicated region
        $region61: #{tpu_custom_call.1} parent=47 // pred_check
          %p3628 = pneg %p224
        $region62: #{tpu_custom_call.1} parent=47 // pred_check_branch
          %3630 = sbr.rel (%p3628) target = $region64
        $region63: #{tpu_custom_call.1} parent=47 // pred_region
          %s3632 = ssub.s32 16, 16
          %3633 = vsyncadd %s3611, %s3632
          %s3634 = smul.addr %s28, 16
          %s3635 = scalar_lea.hbm %s8, %s3634
          %s3637 = sshll.u32 %s3613, 4
          %s3638 = int_to_ptr.vmem [resolvable:$true] %s3637
          %3640 = dma.vmem_to_hbm [thread:$0]  %s3638, 16, %s3635, %s3611
        $region64: #{tpu_custom_call.1} parent=47 // pred_fallthru
          _
      $region48: #{tpu_custom_call.1} parent=5 // pred_fallthru
        _
      %p3641 = scmp.le.s32.totalorder 2, %s23
      // Predicated region
      $region65: #{tpu_custom_call.1} parent=5 // pred_check
        %p3642 = pneg %p3641
      $region66: #{tpu_custom_call.1} parent=5 // pred_check_branch
        %3644 = sbr.rel (%p3642) target = $region68
      $region67: #{tpu_custom_call.1} parent=5 // pred_region
        %s3645 = ssub.s32 %s23, 2
        // Predicated region
        $region69: #{tpu_custom_call.1} parent=67 // pred_check
          %p3646 = pneg %p204
        $region70: #{tpu_custom_call.1} parent=67 // pred_check_branch
          %3648 = sbr.rel (%p3646) target = $region72
        $region71: #{tpu_custom_call.1} parent=67 // pred_region
          %s3649 = sand.u32 %s189, 1
          %s3650 = scalar_lea.sflag [#allocation4], %s3649
          %s3651 = sand.u32 %s189, 1
          %s3652 = smul.addr %s3651, 32
          %s3653 = scalar_lea.vmem [#allocation7], %s3652
          %3654 = dma.done %s3650, 512
        $region72: #{tpu_custom_call.1} parent=67 // pred_fallthru
          _
        // Predicated region
        $region73: #{tpu_custom_call.1} parent=67 // pred_check
          %p3655 = pneg %p230
        $region74: #{tpu_custom_call.1} parent=67 // pred_check_branch
          %3657 = sbr.rel (%p3655) target = $region76
        $region75: #{tpu_custom_call.1} parent=67 // pred_region
          %s3658 = sand.u32 %s215, 1
          %s3659 = scalar_lea.sflag [#allocation9], %s3658
          %s3660 = sand.u32 %s215, 1
          %s3661 = scalar_lea.vmem [#allocation8], %s3660
          %3662 = dma.done %s3659, 16
        $region76: #{tpu_custom_call.1} parent=67 // pred_fallthru
          _
      $region68: #{tpu_custom_call.1} parent=5 // pred_fallthru
        _
    $region6: #{tpu_custom_call.1} parent=1 // loop_footer
      %s27 = sadd.s32 1, %s23
    $region7: #{tpu_custom_call.1} parent=1 // loop_footer_branch
      %22 = sbr.rel target = $region3
    $region8: #{tpu_custom_call.1} parent=1 // loop_exit
      _
    %3663 = vsyncpa [#allocation3], 1
    %s3664 = scalar_lea.sflag [#allocation3], 1
    %3665 = vsyncpa %s3664, 1
    %3666 = vsyncpa [#allocation6], 1
    %3667 = vsyncpa [#allocation4], 1
    %s3668 = scalar_lea.sflag [#allocation4], 1
    %3669 = vsyncpa %s3668, 1
    %3670 = vsyncpa [#allocation9], 1
    %s3671 = scalar_lea.sflag [#allocation9], 1
    %3672 = vsyncpa %s3671, 1

</llo_original>
